<compile_context>
chip_gen: v5e
topology: v5e:2x2
jax: 0.10.0
libtpu: 0.0.40
codegen_flags: <defaults>
</compile_context>

<pallas_src>
import functools

import jax
import jax.numpy as jnp
from jax import lax
from jax.experimental import pallas as pl
from jax.experimental.pallas import tpu as pltpu


# Row indices of the packed (9, C) per-channel vector slab.
_G1, _BE1, _BQ, _BK, _BV, _BP, _G2, _BE2, _BB2 = range(9)


def _layernorm(x, gamma, beta, eps):
  mu = jnp.mean(x, axis=-1, keepdims=True)
  var = jnp.mean(jnp.square(x - mu), axis=-1, keepdims=True)
  return (x - mu) * lax.rsqrt(var + eps) * gamma + beta


def _cross_block_kernel(
    x_ref, x2_ref, vec_ref, bb1_ref,
    wq_ref, wkv_ref, wp_ref, w1_ref, w2_ref,
    o_ref, *, heads, eps, n2_valid, approx_recip):
  f32, bf16 = jnp.float32, jnp.bfloat16
  bt, n1, c = x_ref.shape
  n2 = x2_ref.shape[1]
  hd = c // heads

  vec = vec_ref[...].astype(f32)                      # (9, C) packed vectors
  x = x_ref[...].reshape(bt * n1, c).astype(f32)      # residual stream (f32)
  x2 = x2_ref[...].reshape(bt * n2, c)                # already bf16 (wrapper)

  # ---- LayerNorm 1 + fat projections (bf16 MXU operands, f32 accum) ----
  # softmax scale is pre-folded into wq / bq host-side.
  xn = _layernorm(x, vec[_G1], vec[_BE1], eps).astype(bf16)
  q = (jnp.dot(xn, wq_ref[...], preferred_element_type=f32)
       + vec[_BQ]).astype(bf16)
  kv = jnp.dot(x2, wkv_ref[...], preferred_element_type=f32)   # fused (C, 2C)
  # slice + bias + bf16 cast immediately: no (tokens, 2C) f32 stays live.
  k = (kv[:, :c] + vec[_BK]).astype(bf16)
  v = (kv[:, c:] + vec[_BV]).astype(bf16)

  q3 = q.reshape(bt, n1, c)
  k3 = k.reshape(bt, n2, c)
  v3 = v.reshape(bt, n2, c)

  # Key-padding mask, built once (outside the per-head loop).
  if n2 > n2_valid:
    kidx = lax.broadcasted_iota(jnp.int32, (1, n2), 1)
    key_mask = jnp.where(kidx < n2_valid, 0.0, -1e30).astype(f32)

  # ---- attention (head merge fused into the output projection) ----
  proj_acc = None
  for h in range(heads):
    sl = slice(h * hd, (h + 1) * hd)
    s = jnp.einsum('bqd,bkd->bqk', q3[:, :, sl], k3[:, :, sl],
                   preferred_element_type=f32)
    if n2 > n2_valid:
      s = s + key_mask                                # broadcast over (bt, n1)
    s = s - jnp.max(s, axis=-1, keepdims=True)
    p = jnp.exp(s)
    denom = jnp.sum(p, axis=-1, keepdims=True)
    if approx_recip:
      p = p * pl.reciprocal(denom, approx=True)       # EUP slot (~1e-3 rel)
    else:
      p = p / denom
    oh = jnp.einsum('bqk,bkd->bqd', p.astype(bf16), v3[:, :, sl],
                    preferred_element_type=f32)       # (bt, n1, hd)
    part = jnp.dot(oh.reshape(bt * n1, hd).astype(bf16), wp_ref[h],
                   preferred_element_type=f32)        # (tokens, C)
    proj_acc = part if proj_acc is None else proj_acc + part

  x = x + proj_acc + vec[_BP]                         # residual 1 (dropout=id)

  # ---- LayerNorm 2 + MLP (exact erf GELU, matching nn.GELU default) ----
  xn2 = _layernorm(x, vec[_G2], vec[_BE2], eps).astype(bf16)
  hmid = jnp.dot(xn2, w1_ref[...], preferred_element_type=f32) + bb1_ref[0]
  hmid = 0.5 * hmid * (1.0 + lax.erf(hmid * 0.7071067811865476))
  h2 = jnp.dot(hmid.astype(bf16), w2_ref[...], preferred_element_type=f32)
  h2 = h2 + vec[_BB2]

  o_ref[...] = (x + h2).reshape(bt, n1, c).astype(o_ref.dtype)   # residual 2


def cross_block(x, x2, params, heads, *, block_b=None, approx_recip=True):
  """Fused CrossBlock forward.

  x:  (B, N1, C) queries / residual stream.
  x2: (B, N2, C) cross-attention source (the `mask` arg of CrossBlock.forward).
  """
  B, N1, C = x.shape
  B2, N2, C2 = x2.shape
  assert B == B2 and C == C2 and C % heads == 0
  hd = C // heads
  scale = float(hd ** -0.5)
  f32, bf16 = jnp.float32, jnp.bfloat16

  if block_b is None:
    # >=128 query tokens per grid step (fills the MXU M axis, amortizes the
    # ~0.35us/step grid overhead) while keeping >=2 steps when B allows so the
    # ("parallel",) batch axis shards over both v7x TensorCores.  Single-TC
    # v5e/v6e users can pass block_b=B for one fat step.
    block_b = max(1, min(max(B // 2, 1), (128 + N1 - 1) // N1))
    while B % block_b:
      block_b -= 1
  assert B % block_b == 0

  # k/v source is only ever used in bf16 -> cast before the DMA (halves its
  # HBM->VMEM bytes); pad its token axis to a lane-dense multiple of 128
  # (padded keys get -1e30 added before the softmax inside the kernel).
  N2_pad = ((N2 + 127) // 128) * 128
  x2b = x2.astype(bf16)
  if N2_pad != N2:
    x2b = jnp.pad(x2b, ((0, 0), (0, N2_pad - N2), (0, 0)))

  # Pack the ten per-channel vectors into one (9, C) slab + one (1, mlp) row.
  # Softmax scale folded into wq / bq once, host-side.
  vec = jnp.stack([
      params["g1"], params["be1"], params["bq"] * scale,
      params["bkv"][:C], params["bkv"][C:], params["bp"],
      params["g2"], params["be2"], params["bb2"],
  ]).astype(f32)
  bb1 = params["bb1"].reshape(1, -1).astype(f32)

  # bf16 weights: native MXU dtype, half the DMA / VMEM residency.
  wq = (params["wq"] * scale).astype(bf16)
  wkv = params["wkv"].astype(bf16)
  wp = params["wp"].reshape(heads, hd, C).astype(bf16)   # head-split host-side
  w1 = params["w1"].astype(bf16)
  w2 = params["w2"].astype(bf16)

  def act_spec(n):
    return pl.BlockSpec((block_b, n, C), lambda b: (b, 0, 0))

  def full_spec(a):
    return pl.BlockSpec(a.shape, lambda b: (0,) * a.ndim)

  kernel = functools.partial(
      _cross_block_kernel, heads=heads, eps=1e-5, n2_valid=N2,
      approx_recip=approx_recip)

  return pl.pallas_call(
      kernel,
      grid=(B // block_b,),
      in_specs=[act_spec(N1), act_spec(N2_pad),
                full_spec(vec), full_spec(bb1),
                full_spec(wq), full_spec(wkv), full_spec(wp),
                full_spec(w1), full_spec(w2)],
      out_specs=act_spec(N1),
      out_shape=jax.ShapeDtypeStruct((B, N1, C), x.dtype),
      compiler_params=pltpu.CompilerParams(
          dimension_semantics=("parallel",)),
  )(x, x2b, vec, bb1, wq, wkv, wp, w1, w2)


def init_params(key, dim, heads, mlp_dim):
  ks = jax.random.split(key, 10)

  def lin(k, din, dout):
    kw, kb = jax.random.split(k)
    return (jax.random.normal(kw, (din, dout), jnp.float32) * 0.05,
            jax.random.normal(kb, (dout,), jnp.float32) * 0.05)

  wq, bq = lin(ks[0], dim, dim)
  wkv, bkv = lin(ks[1], dim, 2 * dim)     # nn.Linear(dim, 2*dim): [k | v]
  wp, bp = lin(ks[2], dim, dim)
  w1, bb1 = lin(ks[3], dim, mlp_dim)
  w2, bb2 = lin(ks[4], mlp_dim, dim)
  g1 = 1.0 + 0.1 * jax.random.normal(ks[5], (dim,), jnp.float32)
  be1 = 0.1 * jax.random.normal(ks[6], (dim,), jnp.float32)
  g2 = 1.0 + 0.1 * jax.random.normal(ks[7], (dim,), jnp.float32)
  be2 = 0.1 * jax.random.normal(ks[8], (dim,), jnp.float32)
  return dict(wq=wq, bq=bq, wkv=wkv, bkv=bkv, wp=wp, bp=bp,
              w1=w1, bb1=bb1, w2=w2, bb2=bb2,
              g1=g1, be1=be1, g2=g2, be2=be2)


def reference(x, x2, p, heads):
  def ln(y, g, b):
    mu = y.mean(-1, keepdims=True)
    var = ((y - mu) ** 2).mean(-1, keepdims=True)
    return (y - mu) / jnp.sqrt(var + 1e-5) * g + b

  B, N1, C = x.shape
  hd = C // heads
  xn = ln(x, p["g1"], p["be1"])
  q = xn @ p["wq"] + p["bq"]
  kv = x2 @ p["wkv"] + p["bkv"]
  k, v = kv[..., :C], kv[..., C:]
  q = q.reshape(B, N1, heads, hd).transpose(0, 2, 1, 3)
  k = k.reshape(B, -1, heads, hd).transpose(0, 2, 1, 3)
  v = v.reshape(B, -1, heads, hd).transpose(0, 2, 1, 3)
  attn = jax.nn.softmax((q @ k.transpose(0, 1, 3, 2)) * hd ** -0.5, axis=-1)
  o = (attn @ v).transpose(0, 2, 1, 3).reshape(B, N1, C)
  o = o @ p["wp"] + p["bp"]
  x = x + o
  xn2 = ln(x, p["g2"], p["be2"])
  h = jax.nn.gelu(xn2 @ p["w1"] + p["bb1"], approximate=False)
  h = h @ p["w2"] + p["bb2"]
  return x + h


if __name__ == "__main__":
  # Small but lane/sublane dense shapes: C, MLP multiples of 128; N1 multiple
  # of 8.  N2=32 exercises the key-padding (padded to 128) + mask path.
  B, N1, N2, DIM, HEADS, MLP = 2, 16, 32, 128, 4, 256

  root = jax.random.PRNGKey(0)
  kx, kx2, kp = jax.random.split(root, 3)
  x = jax.random.normal(kx, (B, N1, DIM), jnp.float32)
  # `mask` in CrossBlock.forward is the cross-attention source tensor x2:
  x2 = jax.random.normal(kx2, (B, N2, DIM), jnp.float32)
  params = init_params(kp, DIM, HEADS, MLP)

  out = jax.block_until_ready(cross_block(x, x2, params, HEADS))

  ref = reference(x, x2, params, HEADS)
  assert out.shape == (B, N1, DIM)
  err = float(jnp.max(jnp.abs(out - ref)))
  assert jnp.allclose(out, ref, atol=1e-2, rtol=1e-2), err

  print("KERNEL_OK")
</pallas_src>

<mosaic_0001>
module attributes {stable_mosaic.version = 11 : i64} {
  func.func @_cross_block_kernel(%arg0: i32, %arg1: memref<1x16x128xf32, #tpu.memory_space<vmem>>, %arg2: memref<1x128x128xbf16, #tpu.memory_space<vmem>>, %arg3: memref<9x128xf32, #tpu.memory_space<vmem>>, %arg4: memref<1x256xf32, #tpu.memory_space<vmem>>, %arg5: memref<128x128xbf16, #tpu.memory_space<vmem>>, %arg6: memref<128x256xbf16, #tpu.memory_space<vmem>>, %arg7: memref<4x32x128xbf16, #tpu.memory_space<vmem>>, %arg8: memref<128x256xbf16, #tpu.memory_space<vmem>>, %arg9: memref<256x128xbf16, #tpu.memory_space<vmem>>, %arg10: memref<1x16x128xf32, #tpu.memory_space<vmem>>) attributes {dimension_semantics = [#tpu.dimension_semantics<parallel>], iteration_bounds = array<i64: 2>, scalar_prefetch = 0 : i64, scratch_operands = 0 : i64, tpu.core_type = #tpu.core_type<tc>, window_params = [{transform_indices = @transform_0, window_bounds = array<i64: 1, 16, 128>}, {transform_indices = @transform_1, window_bounds = array<i64: 1, 128, 128>}, {pipeline_mode = #tpu.pipeline_mode<synchronous>, transform_indices = @transform_2, window_bounds = array<i64: 9, 128>}, {pipeline_mode = #tpu.pipeline_mode<synchronous>, transform_indices = @transform_3, window_bounds = array<i64: 1, 256>}, {pipeline_mode = #tpu.pipeline_mode<synchronous>, transform_indices = @transform_4, window_bounds = array<i64: 128, 128>}, {pipeline_mode = #tpu.pipeline_mode<synchronous>, transform_indices = @transform_5, window_bounds = array<i64: 128, 256>}, {pipeline_mode = #tpu.pipeline_mode<synchronous>, transform_indices = @transform_6, window_bounds = array<i64: 4, 32, 128>}, {pipeline_mode = #tpu.pipeline_mode<synchronous>, transform_indices = @transform_7, window_bounds = array<i64: 128, 256>}, {pipeline_mode = #tpu.pipeline_mode<synchronous>, transform_indices = @transform_8, window_bounds = array<i64: 256, 128>}, {transform_indices = @transform_9, window_bounds = array<i64: 1, 16, 128>}]} {
    %c0 = arith.constant 0 : index
    %c0_0 = arith.constant 0 : index
    %0 = vector.load %arg3[%c0, %c0_0] : memref<9x128xf32, #tpu.memory_space<vmem>>, vector<9x128xf32>
    %c0_1 = arith.constant 0 : index
    %c0_2 = arith.constant 0 : index
    %c0_3 = arith.constant 0 : index
    %1 = vector.load %arg1[%c0_1, %c0_2, %c0_3] : memref<1x16x128xf32, #tpu.memory_space<vmem>>, vector<1x16x128xf32>
    %2 = vector.shape_cast %1 : vector<1x16x128xf32> to vector<16x128xf32>
    %c0_4 = arith.constant 0 : index
    %c0_5 = arith.constant 0 : index
    %c0_6 = arith.constant 0 : index
    %3 = vector.load %arg2[%c0_4, %c0_5, %c0_6] : memref<1x128x128xbf16, #tpu.memory_space<vmem>>, vector<1x128x128xbf16>
    %4 = vector.shape_cast %3 : vector<1x128x128xbf16> to vector<128x128xbf16>
    %5 = vector.extract_strided_slice %0 {offsets = [0, 0], sizes = [1, 128], strides = [1, 1]} : vector<9x128xf32> to vector<1x128xf32>
    %6 = vector.shape_cast %5 : vector<1x128xf32> to vector<128xf32>
    %7 = vector.extract_strided_slice %0 {offsets = [1, 0], sizes = [1, 128], strides = [1, 1]} : vector<9x128xf32> to vector<1x128xf32>
    %8 = vector.shape_cast %7 : vector<1x128xf32> to vector<128xf32>
    %cst = arith.constant dense<0.000000e+00> : vector<16xf32>
    %9 = vector.multi_reduction <add>, %2, %cst [1] : vector<16x128xf32> to vector<16xf32>
    %10 = vector.shape_cast %9 : vector<16xf32> to vector<16x1xf32>
    %cst_7 = arith.constant 1.280000e+02 : f32
    %11 = vector.broadcast %cst_7 : f32 to vector<16x1xf32>
    %12 = arith.divf %10, %11 : vector<16x1xf32>
    %13 = vector.broadcast %12 : vector<16x1xf32> to vector<16x128xf32>
    %14 = arith.subf %2, %13 : vector<16x128xf32>
    %15 = arith.mulf %14, %14 : vector<16x128xf32>
    %cst_8 = arith.constant dense<0.000000e+00> : vector<16xf32>
    %16 = vector.multi_reduction <add>, %15, %cst_8 [1] : vector<16x128xf32> to vector<16xf32>
    %17 = vector.shape_cast %16 : vector<16xf32> to vector<16x1xf32>
    %cst_9 = arith.constant 1.280000e+02 : f32
    %18 = vector.broadcast %cst_9 : f32 to vector<16x1xf32>
    %19 = arith.divf %17, %18 : vector<16x1xf32>
    %20 = vector.broadcast %12 : vector<16x1xf32> to vector<16x128xf32>
    %21 = arith.subf %2, %20 : vector<16x128xf32>
    %cst_10 = arith.constant 9.99999974E-6 : f32
    %22 = vector.broadcast %cst_10 : f32 to vector<16x1xf32>
    %23 = arith.addf %19, %22 : vector<16x1xf32>
    %24 = math.rsqrt %23 : vector<16x1xf32>
    %25 = vector.broadcast %24 : vector<16x1xf32> to vector<16x128xf32>
    %26 = arith.mulf %21, %25 : vector<16x128xf32>
    %27 = vector.shape_cast %6 : vector<128xf32> to vector<1x128xf32>
    %28 = vector.broadcast %27 : vector<1x128xf32> to vector<16x128xf32>
    %29 = arith.mulf %26, %28 : vector<16x128xf32>
    %30 = vector.shape_cast %8 : vector<128xf32> to vector<1x128xf32>
    %31 = vector.broadcast %30 : vector<1x128xf32> to vector<16x128xf32>
    %32 = arith.addf %29, %31 : vector<16x128xf32>
    %33 = arith.truncf %32 : vector<16x128xf32> to vector<16x128xbf16>
    %c0_11 = arith.constant 0 : index
    %c0_12 = arith.constant 0 : index
    %34 = vector.load %arg5[%c0_11, %c0_12] : memref<128x128xbf16, #tpu.memory_space<vmem>>, vector<128x128xbf16>
    %cst_13 = arith.constant dense<0.000000e+00> : vector<16x128xf32>
    %35 = tpu.matmul %33, %34, %cst_13 {dimension_numbers = #tpu.dot_dimension_numbers<[1], [0], [0], [1], [0, 0, 1, 1], [], []>} : vector<16x128xbf16>, vector<128x128xbf16>, vector<16x128xf32> -> vector<16x128xf32>
    %36 = vector.extract_strided_slice %0 {offsets = [2, 0], sizes = [1, 128], strides = [1, 1]} : vector<9x128xf32> to vector<1x128xf32>
    %37 = vector.shape_cast %36 : vector<1x128xf32> to vector<128xf32>
    %38 = vector.shape_cast %37 : vector<128xf32> to vector<1x128xf32>
    %39 = vector.broadcast %38 : vector<1x128xf32> to vector<16x128xf32>
    %40 = arith.addf %35, %39 : vector<16x128xf32>
    %41 = arith.truncf %40 : vector<16x128xf32> to vector<16x128xbf16>
    %c0_14 = arith.constant 0 : index
    %c0_15 = arith.constant 0 : index
    %42 = vector.load %arg6[%c0_14, %c0_15] : memref<128x256xbf16, #tpu.memory_space<vmem>>, vector<128x256xbf16>
    %cst_16 = arith.constant dense<0.000000e+00> : vector<128x256xf32>
    %43 = tpu.matmul %4, %42, %cst_16 {dimension_numbers = #tpu.dot_dimension_numbers<[1], [0], [0], [1], [0, 0, 1, 1], [], []>} : vector<128x128xbf16>, vector<128x256xbf16>, vector<128x256xf32> -> vector<128x256xf32>
    %44 = vector.extract_strided_slice %43 {offsets = [0, 0], sizes = [128, 128], strides = [1, 1]} : vector<128x256xf32> to vector<128x128xf32>
    %45 = vector.extract_strided_slice %0 {offsets = [3, 0], sizes = [1, 128], strides = [1, 1]} : vector<9x128xf32> to vector<1x128xf32>
    %46 = vector.shape_cast %45 : vector<1x128xf32> to vector<128xf32>
    %47 = vector.shape_cast %46 : vector<128xf32> to vector<1x128xf32>
    %48 = vector.broadcast %47 : vector<1x128xf32> to vector<128x128xf32>
    %49 = arith.addf %44, %48 : vector<128x128xf32>
    %50 = arith.truncf %49 : vector<128x128xf32> to vector<128x128xbf16>
    %51 = vector.extract_strided_slice %43 {offsets = [0, 128], sizes = [128, 128], strides = [1, 1]} : vector<128x256xf32> to vector<128x128xf32>
    %52 = vector.extract_strided_slice %0 {offsets = [4, 0], sizes = [1, 128], strides = [1, 1]} : vector<9x128xf32> to vector<1x128xf32>
    %53 = vector.shape_cast %52 : vector<1x128xf32> to vector<128xf32>
    %54 = vector.shape_cast %53 : vector<128xf32> to vector<1x128xf32>
    %55 = vector.broadcast %54 : vector<1x128xf32> to vector<128x128xf32>
    %56 = arith.addf %51, %55 : vector<128x128xf32>
    %57 = arith.truncf %56 : vector<128x128xf32> to vector<128x128xbf16>
    %58 = vector.shape_cast %41 : vector<16x128xbf16> to vector<1x16x128xbf16>
    %59 = vector.shape_cast %50 : vector<128x128xbf16> to vector<1x128x128xbf16>
    %60 = vector.shape_cast %57 : vector<128x128xbf16> to vector<1x128x128xbf16>
    %61 = tpu.iota {dimensions = array<i32: 1>} : vector<1x128xi32>
    %c32_i32 = arith.constant 32 : i32
    %62 = vector.broadcast %c32_i32 : i32 to vector<1x128xi32>
    %63 = arith.cmpi slt, %61, %62 : vector<1x128xi32>
    %cst_17 = arith.constant 0.000000e+00 : f32
    %cst_18 = arith.constant -1.000000e+30 : f32
    %64 = vector.broadcast %cst_17 : f32 to vector<1x128xf32>
    %65 = vector.broadcast %cst_18 : f32 to vector<1x128xf32>
    %66 = arith.select %63, %64, %65 : vector<1x128xi1>, vector<1x128xf32>
    %67 = vector.extract_strided_slice %58 {offsets = [0, 0, 0], sizes = [1, 16, 32], strides = [1, 1, 1]} : vector<1x16x128xbf16> to vector<1x16x32xbf16>
    %68 = vector.extract_strided_slice %59 {offsets = [0, 0, 0], sizes = [1, 128, 32], strides = [1, 1, 1]} : vector<1x128x128xbf16> to vector<1x128x32xbf16>
    "tpu.trace_start"() <{level = 10 : i32, message = "bqd,bkd->bqk"}> : () -> ()
    %cst_19 = arith.constant dense<0.000000e+00> : vector<1x16x128xf32>
    %69 = tpu.matmul %67, %68, %cst_19 {dimension_numbers = #tpu.dot_dimension_numbers<[2], [2], [1], [1], [0, 0, 0, 1, 1, 1], [0], [0]>} : vector<1x16x32xbf16>, vector<1x128x32xbf16>, vector<1x16x128xf32> -> vector<1x16x128xf32>
    "tpu.trace_stop"() : () -> ()
    %70 = vector.shape_cast %66 : vector<1x128xf32> to vector<1x1x128xf32>
    %71 = vector.broadcast %70 : vector<1x1x128xf32> to vector<1x16x128xf32>
    %72 = arith.addf %69, %71 : vector<1x16x128xf32>
    %cst_20 = arith.constant dense<0xFF800000> : vector<1x16xf32>
    %73 = vector.multi_reduction <maximumf>, %72, %cst_20 [2] : vector<1x16x128xf32> to vector<1x16xf32>
    %74 = vector.shape_cast %73 : vector<1x16xf32> to vector<1x16x1xf32>
    %75 = vector.broadcast %74 : vector<1x16x1xf32> to vector<1x16x128xf32>
    %76 = arith.subf %72, %75 : vector<1x16x128xf32>
    %77 = math.exp %76 : vector<1x16x128xf32>
    %cst_21 = arith.constant dense<0.000000e+00> : vector<1x16xf32>
    %78 = vector.multi_reduction <add>, %77, %cst_21 [2] : vector<1x16x128xf32> to vector<1x16xf32>
    %79 = vector.shape_cast %78 : vector<1x16xf32> to vector<1x16x1xf32>
    %80 = tpu.reciprocal %79 {approx = true} : vector<1x16x1xf32> -> vector<1x16x1xf32>
    %81 = vector.broadcast %80 : vector<1x16x1xf32> to vector<1x16x128xf32>
    %82 = arith.mulf %77, %81 : vector<1x16x128xf32>
    %83 = arith.truncf %82 : vector<1x16x128xf32> to vector<1x16x128xbf16>
    %84 = vector.extract_strided_slice %60 {offsets = [0, 0, 0], sizes = [1, 128, 32], strides = [1, 1, 1]} : vector<1x128x128xbf16> to vector<1x128x32xbf16>
    "tpu.trace_start"() <{level = 10 : i32, message = "bqk,bkd->bqd"}> : () -> ()
    %cst_22 = arith.constant dense<0.000000e+00> : vector<1x16x32xf32>
    %85 = tpu.matmul %83, %84, %cst_22 {dimension_numbers = #tpu.dot_dimension_numbers<[2], [1], [1], [2], [0, 0, 0, 1, 1, 2], [0], [0]>} : vector<1x16x128xbf16>, vector<1x128x32xbf16>, vector<1x16x32xf32> -> vector<1x16x32xf32>
    "tpu.trace_stop"() : () -> ()
    %86 = vector.shape_cast %85 : vector<1x16x32xf32> to vector<16x32xf32>
    %87 = arith.truncf %86 : vector<16x32xf32> to vector<16x32xbf16>
    %c0_23 = arith.constant 0 : index
    %c0_24 = arith.constant 0 : index
    %c0_25 = arith.constant 0 : index
    %88 = vector.load %arg7[%c0_23, %c0_24, %c0_25] : memref<4x32x128xbf16, #tpu.memory_space<vmem>>, vector<1x32x128xbf16>
    %89 = vector.shape_cast %88 : vector<1x32x128xbf16> to vector<32x128xbf16>
    %cst_26 = arith.constant dense<0.000000e+00> : vector<16x128xf32>
    %90 = tpu.matmul %87, %89, %cst_26 {dimension_numbers = #tpu.dot_dimension_numbers<[1], [0], [0], [1], [0, 0, 1, 1], [], []>} : vector<16x32xbf16>, vector<32x128xbf16>, vector<16x128xf32> -> vector<16x128xf32>
    %91 = vector.extract_strided_slice %58 {offsets = [0, 0, 32], sizes = [1, 16, 32], strides = [1, 1, 1]} : vector<1x16x128xbf16> to vector<1x16x32xbf16>
    %92 = vector.extract_strided_slice %59 {offsets = [0, 0, 32], sizes = [1, 128, 32], strides = [1, 1, 1]} : vector<1x128x128xbf16> to vector<1x128x32xbf16>
    "tpu.trace_start"() <{level = 10 : i32, message = "bqd,bkd->bqk"}> : () -> ()
    %cst_27 = arith.constant dense<0.000000e+00> : vector<1x16x128xf32>
    %93 = tpu.matmul %91, %92, %cst_27 {dimension_numbers = #tpu.dot_dimension_numbers<[2], [2], [1], [1], [0, 0, 0, 1, 1, 1], [0], [0]>} : vector<1x16x32xbf16>, vector<1x128x32xbf16>, vector<1x16x128xf32> -> vector<1x16x128xf32>
    "tpu.trace_stop"() : () -> ()
    %94 = vector.shape_cast %66 : vector<1x128xf32> to vector<1x1x128xf32>
    %95 = vector.broadcast %94 : vector<1x1x128xf32> to vector<1x16x128xf32>
    %96 = arith.addf %93, %95 : vector<1x16x128xf32>
    %cst_28 = arith.constant dense<0xFF800000> : vector<1x16xf32>
    %97 = vector.multi_reduction <maximumf>, %96, %cst_28 [2] : vector<1x16x128xf32> to vector<1x16xf32>
    %98 = vector.shape_cast %97 : vector<1x16xf32> to vector<1x16x1xf32>
    %99 = vector.broadcast %98 : vector<1x16x1xf32> to vector<1x16x128xf32>
    %100 = arith.subf %96, %99 : vector<1x16x128xf32>
    %101 = math.exp %100 : vector<1x16x128xf32>
    %cst_29 = arith.constant dense<0.000000e+00> : vector<1x16xf32>
    %102 = vector.multi_reduction <add>, %101, %cst_29 [2] : vector<1x16x128xf32> to vector<1x16xf32>
    %103 = vector.shape_cast %102 : vector<1x16xf32> to vector<1x16x1xf32>
    %104 = tpu.reciprocal %103 {approx = true} : vector<1x16x1xf32> -> vector<1x16x1xf32>
    %105 = vector.broadcast %104 : vector<1x16x1xf32> to vector<1x16x128xf32>
    %106 = arith.mulf %101, %105 : vector<1x16x128xf32>
    %107 = arith.truncf %106 : vector<1x16x128xf32> to vector<1x16x128xbf16>
    %108 = vector.extract_strided_slice %60 {offsets = [0, 0, 32], sizes = [1, 128, 32], strides = [1, 1, 1]} : vector<1x128x128xbf16> to vector<1x128x32xbf16>
    "tpu.trace_start"() <{level = 10 : i32, message = "bqk,bkd->bqd"}> : () -> ()
    %cst_30 = arith.constant dense<0.000000e+00> : vector<1x16x32xf32>
    %109 = tpu.matmul %107, %108, %cst_30 {dimension_numbers = #tpu.dot_dimension_numbers<[2], [1], [1], [2], [0, 0, 0, 1, 1, 2], [0], [0]>} : vector<1x16x128xbf16>, vector<1x128x32xbf16>, vector<1x16x32xf32> -> vector<1x16x32xf32>
    "tpu.trace_stop"() : () -> ()
    %110 = vector.shape_cast %109 : vector<1x16x32xf32> to vector<16x32xf32>
    %111 = arith.truncf %110 : vector<16x32xf32> to vector<16x32xbf16>
    %c1 = arith.constant 1 : index
    %c0_31 = arith.constant 0 : index
    %c0_32 = arith.constant 0 : index
    %112 = vector.load %arg7[%c1, %c0_31, %c0_32] : memref<4x32x128xbf16, #tpu.memory_space<vmem>>, vector<1x32x128xbf16>
    %113 = vector.shape_cast %112 : vector<1x32x128xbf16> to vector<32x128xbf16>
    %cst_33 = arith.constant dense<0.000000e+00> : vector<16x128xf32>
    %114 = tpu.matmul %111, %113, %cst_33 {dimension_numbers = #tpu.dot_dimension_numbers<[1], [0], [0], [1], [0, 0, 1, 1], [], []>} : vector<16x32xbf16>, vector<32x128xbf16>, vector<16x128xf32> -> vector<16x128xf32>
    %115 = arith.addf %90, %114 : vector<16x128xf32>
    %116 = vector.extract_strided_slice %58 {offsets = [0, 0, 64], sizes = [1, 16, 32], strides = [1, 1, 1]} : vector<1x16x128xbf16> to vector<1x16x32xbf16>
    %117 = vector.extract_strided_slice %59 {offsets = [0, 0, 64], sizes = [1, 128, 32], strides = [1, 1, 1]} : vector<1x128x128xbf16> to vector<1x128x32xbf16>
    "tpu.trace_start"() <{level = 10 : i32, message = "bqd,bkd->bqk"}> : () -> ()
    %cst_34 = arith.constant dense<0.000000e+00> : vector<1x16x128xf32>
    %118 = tpu.matmul %116, %117, %cst_34 {dimension_numbers = #tpu.dot_dimension_numbers<[2], [2], [1], [1], [0, 0, 0, 1, 1, 1], [0], [0]>} : vector<1x16x32xbf16>, vector<1x128x32xbf16>, vector<1x16x128xf32> -> vector<1x16x128xf32>
    "tpu.trace_stop"() : () -> ()
    %119 = vector.shape_cast %66 : vector<1x128xf32> to vector<1x1x128xf32>
    %120 = vector.broadcast %119 : vector<1x1x128xf32> to vector<1x16x128xf32>
    %121 = arith.addf %118, %120 : vector<1x16x128xf32>
    %cst_35 = arith.constant dense<0xFF800000> : vector<1x16xf32>
    %122 = vector.multi_reduction <maximumf>, %121, %cst_35 [2] : vector<1x16x128xf32> to vector<1x16xf32>
    %123 = vector.shape_cast %122 : vector<1x16xf32> to vector<1x16x1xf32>
    %124 = vector.broadcast %123 : vector<1x16x1xf32> to vector<1x16x128xf32>
    %125 = arith.subf %121, %124 : vector<1x16x128xf32>
    %126 = math.exp %125 : vector<1x16x128xf32>
    %cst_36 = arith.constant dense<0.000000e+00> : vector<1x16xf32>
    %127 = vector.multi_reduction <add>, %126, %cst_36 [2] : vector<1x16x128xf32> to vector<1x16xf32>
    %128 = vector.shape_cast %127 : vector<1x16xf32> to vector<1x16x1xf32>
    %129 = tpu.reciprocal %128 {approx = true} : vector<1x16x1xf32> -> vector<1x16x1xf32>
    %130 = vector.broadcast %129 : vector<1x16x1xf32> to vector<1x16x128xf32>
    %131 = arith.mulf %126, %130 : vector<1x16x128xf32>
    %132 = arith.truncf %131 : vector<1x16x128xf32> to vector<1x16x128xbf16>
    %133 = vector.extract_strided_slice %60 {offsets = [0, 0, 64], sizes = [1, 128, 32], strides = [1, 1, 1]} : vector<1x128x128xbf16> to vector<1x128x32xbf16>
    "tpu.trace_start"() <{level = 10 : i32, message = "bqk,bkd->bqd"}> : () -> ()
    %cst_37 = arith.constant dense<0.000000e+00> : vector<1x16x32xf32>
    %134 = tpu.matmul %132, %133, %cst_37 {dimension_numbers = #tpu.dot_dimension_numbers<[2], [1], [1], [2], [0, 0, 0, 1, 1, 2], [0], [0]>} : vector<1x16x128xbf16>, vector<1x128x32xbf16>, vector<1x16x32xf32> -> vector<1x16x32xf32>
    "tpu.trace_stop"() : () -> ()
    %135 = vector.shape_cast %134 : vector<1x16x32xf32> to vector<16x32xf32>
    %136 = arith.truncf %135 : vector<16x32xf32> to vector<16x32xbf16>
    %c2 = arith.constant 2 : index
    %c0_38 = arith.constant 0 : index
    %c0_39 = arith.constant 0 : index
    %137 = vector.load %arg7[%c2, %c0_38, %c0_39] : memref<4x32x128xbf16, #tpu.memory_space<vmem>>, vector<1x32x128xbf16>
    %138 = vector.shape_cast %137 : vector<1x32x128xbf16> to vector<32x128xbf16>
    %cst_40 = arith.constant dense<0.000000e+00> : vector<16x128xf32>
    %139 = tpu.matmul %136, %138, %cst_40 {dimension_numbers = #tpu.dot_dimension_numbers<[1], [0], [0], [1], [0, 0, 1, 1], [], []>} : vector<16x32xbf16>, vector<32x128xbf16>, vector<16x128xf32> -> vector<16x128xf32>
    %140 = arith.addf %115, %139 : vector<16x128xf32>
    %141 = vector.extract_strided_slice %58 {offsets = [0, 0, 96], sizes = [1, 16, 32], strides = [1, 1, 1]} : vector<1x16x128xbf16> to vector<1x16x32xbf16>
    %142 = vector.extract_strided_slice %59 {offsets = [0, 0, 96], sizes = [1, 128, 32], strides = [1, 1, 1]} : vector<1x128x128xbf16> to vector<1x128x32xbf16>
    "tpu.trace_start"() <{level = 10 : i32, message = "bqd,bkd->bqk"}> : () -> ()
    %cst_41 = arith.constant dense<0.000000e+00> : vector<1x16x128xf32>
    %143 = tpu.matmul %141, %142, %cst_41 {dimension_numbers = #tpu.dot_dimension_numbers<[2], [2], [1], [1], [0, 0, 0, 1, 1, 1], [0], [0]>} : vector<1x16x32xbf16>, vector<1x128x32xbf16>, vector<1x16x128xf32> -> vector<1x16x128xf32>
    "tpu.trace_stop"() : () -> ()
    %144 = vector.shape_cast %66 : vector<1x128xf32> to vector<1x1x128xf32>
    %145 = vector.broadcast %144 : vector<1x1x128xf32> to vector<1x16x128xf32>
    %146 = arith.addf %143, %145 : vector<1x16x128xf32>
    %cst_42 = arith.constant dense<0xFF800000> : vector<1x16xf32>
    %147 = vector.multi_reduction <maximumf>, %146, %cst_42 [2] : vector<1x16x128xf32> to vector<1x16xf32>
    %148 = vector.shape_cast %147 : vector<1x16xf32> to vector<1x16x1xf32>
    %149 = vector.broadcast %148 : vector<1x16x1xf32> to vector<1x16x128xf32>
    %150 = arith.subf %146, %149 : vector<1x16x128xf32>
    %151 = math.exp %150 : vector<1x16x128xf32>
    %cst_43 = arith.constant dense<0.000000e+00> : vector<1x16xf32>
    %152 = vector.multi_reduction <add>, %151, %cst_43 [2] : vector<1x16x128xf32> to vector<1x16xf32>
    %153 = vector.shape_cast %152 : vector<1x16xf32> to vector<1x16x1xf32>
    %154 = tpu.reciprocal %153 {approx = true} : vector<1x16x1xf32> -> vector<1x16x1xf32>
    %155 = vector.broadcast %154 : vector<1x16x1xf32> to vector<1x16x128xf32>
    %156 = arith.mulf %151, %155 : vector<1x16x128xf32>
    %157 = arith.truncf %156 : vector<1x16x128xf32> to vector<1x16x128xbf16>
    %158 = vector.extract_strided_slice %60 {offsets = [0, 0, 96], sizes = [1, 128, 32], strides = [1, 1, 1]} : vector<1x128x128xbf16> to vector<1x128x32xbf16>
    "tpu.trace_start"() <{level = 10 : i32, message = "bqk,bkd->bqd"}> : () -> ()
    %cst_44 = arith.constant dense<0.000000e+00> : vector<1x16x32xf32>
    %159 = tpu.matmul %157, %158, %cst_44 {dimension_numbers = #tpu.dot_dimension_numbers<[2], [1], [1], [2], [0, 0, 0, 1, 1, 2], [0], [0]>} : vector<1x16x128xbf16>, vector<1x128x32xbf16>, vector<1x16x32xf32> -> vector<1x16x32xf32>
    "tpu.trace_stop"() : () -> ()
    %160 = vector.shape_cast %159 : vector<1x16x32xf32> to vector<16x32xf32>
    %161 = arith.truncf %160 : vector<16x32xf32> to vector<16x32xbf16>
    %c3 = arith.constant 3 : index
    %c0_45 = arith.constant 0 : index
    %c0_46 = arith.constant 0 : index
    %162 = vector.load %arg7[%c3, %c0_45, %c0_46] : memref<4x32x128xbf16, #tpu.memory_space<vmem>>, vector<1x32x128xbf16>
    %163 = vector.shape_cast %162 : vector<1x32x128xbf16> to vector<32x128xbf16>
    %cst_47 = arith.constant dense<0.000000e+00> : vector<16x128xf32>
    %164 = tpu.matmul %161, %163, %cst_47 {dimension_numbers = #tpu.dot_dimension_numbers<[1], [0], [0], [1], [0, 0, 1, 1], [], []>} : vector<16x32xbf16>, vector<32x128xbf16>, vector<16x128xf32> -> vector<16x128xf32>
    %165 = arith.addf %140, %164 : vector<16x128xf32>
    %166 = arith.addf %2, %165 : vector<16x128xf32>
    %167 = vector.extract_strided_slice %0 {offsets = [5, 0], sizes = [1, 128], strides = [1, 1]} : vector<9x128xf32> to vector<1x128xf32>
    %168 = vector.shape_cast %167 : vector<1x128xf32> to vector<128xf32>
    %169 = vector.shape_cast %168 : vector<128xf32> to vector<1x128xf32>
    %170 = vector.broadcast %169 : vector<1x128xf32> to vector<16x128xf32>
    %171 = arith.addf %166, %170 : vector<16x128xf32>
    %172 = vector.extract_strided_slice %0 {offsets = [6, 0], sizes = [1, 128], strides = [1, 1]} : vector<9x128xf32> to vector<1x128xf32>
    %173 = vector.shape_cast %172 : vector<1x128xf32> to vector<128xf32>
    %174 = vector.extract_strided_slice %0 {offsets = [7, 0], sizes = [1, 128], strides = [1, 1]} : vector<9x128xf32> to vector<1x128xf32>
    %175 = vector.shape_cast %174 : vector<1x128xf32> to vector<128xf32>
    %cst_48 = arith.constant dense<0.000000e+00> : vector<16xf32>
    %176 = vector.multi_reduction <add>, %171, %cst_48 [1] : vector<16x128xf32> to vector<16xf32>
    %177 = vector.shape_cast %176 : vector<16xf32> to vector<16x1xf32>
    %cst_49 = arith.constant 1.280000e+02 : f32
    %178 = vector.broadcast %cst_49 : f32 to vector<16x1xf32>
    %179 = arith.divf %177, %178 : vector<16x1xf32>
    %180 = vector.broadcast %179 : vector<16x1xf32> to vector<16x128xf32>
    %181 = arith.subf %171, %180 : vector<16x128xf32>
    %182 = arith.mulf %181, %181 : vector<16x128xf32>
    %cst_50 = arith.constant dense<0.000000e+00> : vector<16xf32>
    %183 = vector.multi_reduction <add>, %182, %cst_50 [1] : vector<16x128xf32> to vector<16xf32>
    %184 = vector.shape_cast %183 : vector<16xf32> to vector<16x1xf32>
    %cst_51 = arith.constant 1.280000e+02 : f32
    %185 = vector.broadcast %cst_51 : f32 to vector<16x1xf32>
    %186 = arith.divf %184, %185 : vector<16x1xf32>
    %187 = vector.broadcast %179 : vector<16x1xf32> to vector<16x128xf32>
    %188 = arith.subf %171, %187 : vector<16x128xf32>
    %cst_52 = arith.constant 9.99999974E-6 : f32
    %189 = vector.broadcast %cst_52 : f32 to vector<16x1xf32>
    %190 = arith.addf %186, %189 : vector<16x1xf32>
    %191 = math.rsqrt %190 : vector<16x1xf32>
    %192 = vector.broadcast %191 : vector<16x1xf32> to vector<16x128xf32>
    %193 = arith.mulf %188, %192 : vector<16x128xf32>
    %194 = vector.shape_cast %173 : vector<128xf32> to vector<1x128xf32>
    %195 = vector.broadcast %194 : vector<1x128xf32> to vector<16x128xf32>
    %196 = arith.mulf %193, %195 : vector<16x128xf32>
    %197 = vector.shape_cast %175 : vector<128xf32> to vector<1x128xf32>
    %198 = vector.broadcast %197 : vector<1x128xf32> to vector<16x128xf32>
    %199 = arith.addf %196, %198 : vector<16x128xf32>
    %200 = arith.truncf %199 : vector<16x128xf32> to vector<16x128xbf16>
    %c0_53 = arith.constant 0 : index
    %c0_54 = arith.constant 0 : index
    %201 = vector.load %arg8[%c0_53, %c0_54] : memref<128x256xbf16, #tpu.memory_space<vmem>>, vector<128x256xbf16>
    %cst_55 = arith.constant dense<0.000000e+00> : vector<16x256xf32>
    %202 = tpu.matmul %200, %201, %cst_55 {dimension_numbers = #tpu.dot_dimension_numbers<[1], [0], [0], [1], [0, 0, 1, 1], [], []>} : vector<16x128xbf16>, vector<128x256xbf16>, vector<16x256xf32> -> vector<16x256xf32>
    %c0_56 = arith.constant 0 : index
    %c0_57 = arith.constant 0 : index
    %203 = vector.load %arg4[%c0_56, %c0_57] : memref<1x256xf32, #tpu.memory_space<vmem>>, vector<1x256xf32>
    %204 = vector.shape_cast %203 : vector<1x256xf32> to vector<256xf32>
    %205 = vector.shape_cast %204 : vector<256xf32> to vector<1x256xf32>
    %206 = vector.broadcast %205 : vector<1x256xf32> to vector<16x256xf32>
    %207 = arith.addf %202, %206 : vector<16x256xf32>
    %cst_58 = arith.constant 5.000000e-01 : f32
    %208 = vector.broadcast %cst_58 : f32 to vector<16x256xf32>
    %209 = arith.mulf %208, %207 : vector<16x256xf32>
    %cst_59 = arith.constant 0.707106769 : f32
    %210 = vector.broadcast %cst_59 : f32 to vector<16x256xf32>
    %211 = arith.mulf %207, %210 : vector<16x256xf32>
    %212 = math.erf %211 : vector<16x256xf32>
    %cst_60 = arith.constant 1.000000e+00 : f32
    %213 = vector.broadcast %cst_60 : f32 to vector<16x256xf32>
    %214 = arith.addf %213, %212 : vector<16x256xf32>
    %215 = arith.mulf %209, %214 : vector<16x256xf32>
    %216 = arith.truncf %215 : vector<16x256xf32> to vector<16x256xbf16>
    %c0_61 = arith.constant 0 : index
    %c0_62 = arith.constant 0 : index
    %217 = vector.load %arg9[%c0_61, %c0_62] : memref<256x128xbf16, #tpu.memory_space<vmem>>, vector<256x128xbf16>
    %cst_63 = arith.constant dense<0.000000e+00> : vector<16x128xf32>
    %218 = tpu.matmul %216, %217, %cst_63 {dimension_numbers = #tpu.dot_dimension_numbers<[1], [0], [0], [1], [0, 0, 1, 1], [], []>} : vector<16x256xbf16>, vector<256x128xbf16>, vector<16x128xf32> -> vector<16x128xf32>
    %219 = vector.extract_strided_slice %0 {offsets = [8, 0], sizes = [1, 128], strides = [1, 1]} : vector<9x128xf32> to vector<1x128xf32>
    %220 = vector.shape_cast %219 : vector<1x128xf32> to vector<128xf32>
    %221 = vector.shape_cast %220 : vector<128xf32> to vector<1x128xf32>
    %222 = vector.broadcast %221 : vector<1x128xf32> to vector<16x128xf32>
    %223 = arith.addf %218, %222 : vector<16x128xf32>
    %224 = arith.addf %171, %223 : vector<16x128xf32>
    %225 = vector.shape_cast %224 : vector<16x128xf32> to vector<1x16x128xf32>
    %c0_64 = arith.constant 0 : index
    %c0_65 = arith.constant 0 : index
    %c0_66 = arith.constant 0 : index
    %226 = vector.load %arg10[%c0_64, %c0_65, %c0_66] : memref<1x16x128xf32, #tpu.memory_space<vmem>>, vector<1x16x128xf32>
    tpu.vector_store %arg10[%c0_64, %c0_65, %c0_66], %225 {strides = array<i32>} : memref<1x16x128xf32, #tpu.memory_space<vmem>>, vector<1x16x128xf32>,
    return
  }
  func.func @transform_0(%arg0: i32) -> (i32, i32, i32) {
    %c0_i32 = arith.constant 0 : i32
    %c0_i32_0 = arith.constant 0 : i32
    %c0_i32_1 = arith.constant 0 : i32
    return %arg0, %c0_i32, %c0_i32_0 : i32, i32, i32
  }
  func.func @transform_1(%arg0: i32) -> (i32, i32, i32) {
    %c0_i32 = arith.constant 0 : i32
    %c0_i32_0 = arith.constant 0 : i32
    %c0_i32_1 = arith.constant 0 : i32
    return %arg0, %c0_i32, %c0_i32_0 : i32, i32, i32
  }
  func.func @transform_2(%arg0: i32) -> (i32, i32) {
    %c0_i32 = arith.constant 0 : i32
    %c0_i32_0 = arith.constant 0 : i32
    %c0_i32_1 = arith.constant 0 : i32
    return %c0_i32, %c0_i32_0 : i32, i32
  }
  func.func @transform_3(%arg0: i32) -> (i32, i32) {
    %c0_i32 = arith.constant 0 : i32
    %c0_i32_0 = arith.constant 0 : i32
    %c0_i32_1 = arith.constant 0 : i32
    return %c0_i32, %c0_i32_0 : i32, i32
  }
  func.func @transform_4(%arg0: i32) -> (i32, i32) {
    %c0_i32 = arith.constant 0 : i32
    %c0_i32_0 = arith.constant 0 : i32
    %c0_i32_1 = arith.constant 0 : i32
    return %c0_i32, %c0_i32_0 : i32, i32
  }
  func.func @transform_5(%arg0: i32) -> (i32, i32) {
    %c0_i32 = arith.constant 0 : i32
    %c0_i32_0 = arith.constant 0 : i32
    %c0_i32_1 = arith.constant 0 : i32
    return %c0_i32, %c0_i32_0 : i32, i32
  }
  func.func @transform_6(%arg0: i32) -> (i32, i32, i32) {
    %c0_i32 = arith.constant 0 : i32
    %c0_i32_0 = arith.constant 0 : i32
    %c0_i32_1 = arith.constant 0 : i32
    %c0_i32_2 = arith.constant 0 : i32
    return %c0_i32, %c0_i32_0, %c0_i32_1 : i32, i32, i32
  }
  func.func @transform_7(%arg0: i32) -> (i32, i32) {
    %c0_i32 = arith.constant 0 : i32
    %c0_i32_0 = arith.constant 0 : i32
    %c0_i32_1 = arith.constant 0 : i32
    return %c0_i32, %c0_i32_0 : i32, i32
  }
  func.func @transform_8(%arg0: i32) -> (i32, i32) {
    %c0_i32 = arith.constant 0 : i32
    %c0_i32_0 = arith.constant 0 : i32
    %c0_i32_1 = arith.constant 0 : i32
    return %c0_i32, %c0_i32_0 : i32, i32
  }
  func.func @transform_9(%arg0: i32) -> (i32, i32, i32) {
    %c0_i32 = arith.constant 0 : i32
    %c0_i32_0 = arith.constant 0 : i32
    %c0_i32_1 = arith.constant 0 : i32
    return %arg0, %c0_i32, %c0_i32_0 : i32, i32, i32
  }
}

</mosaic_0001>

<llo_original>
// kernel: tpu_custom_call.1
$region0: #{tpu_custom_call.1}
  #allocation0 [shape = 'u32[]', space=smem, size = 0x4, offset = 0x4, fixed_abs, tag = 'smem constant byte address 0x4 - core index']
  #allocation1 [shape = 'u32[72,128]{1,0:T(1,128)}', space=vmem, size = 0x9000, scoped, tag = 'internal scratch']
  %s0 = inlined_call_operand.hbm [shape: f32[2,16,128], index: 0, kind: input, shape index: {}]
  %s1 = inlined_call_operand.hbm [shape: bf16[2,128,128], index: 1, kind: input, shape index: {}]
  %s2 = inlined_call_operand.hbm [shape: f32[9,128], index: 2, kind: input, shape index: {}]
  %s3 = inlined_call_operand.vmem [shape: f32[1,256], index: 3, kind: input, shape index: {}]
  %s4 = inlined_call_operand.hbm [shape: bf16[128,128], index: 4, kind: input, shape index: {}]
  %s5 = inlined_call_operand.hbm [shape: bf16[128,256], index: 5, kind: input, shape index: {}]
  %s6 = inlined_call_operand.hbm [shape: bf16[4,32,128], index: 6, kind: input, shape index: {}]
  %s7 = inlined_call_operand.hbm [shape: bf16[128,256], index: 7, kind: input, shape index: {}]
  %s8 = inlined_call_operand.hbm [shape: bf16[256,128], index: 8, kind: input, shape index: {}]
  %s9 = inlined_call_operand.hbm [shape: f32[2,16,128], index: 9, kind: output, shape index: {}]
  %s10 = sld [smem:[#allocation0]]
  $region101: #{tpu_custom_call.1} parent=0
    _
  %s12 = ssub.s32 1, %s10
  %s13 = scalar_select 0, %s12, %s10
  $region1: #{tpu_custom_call.1} parent=0
    #allocation2 [shape = 'u8[16384]{0}', space=vmem, size = 0x4000, scoped, tag = 'input window, operand 0']
    #allocation3 [shape = 's32[2]{0}', space=sflag, size = 0x8, scoped, tag = 'scoped memory for tpu_custom_call.1']
    #allocation4 [shape = 's32[2]{0}', space=sflag, size = 0x8, scoped, tag = 'scoped memory for tpu_custom_call.1']
    #allocation5 [shape = 'u8[65536]{0}', space=vmem, size = 0x10000, scoped, tag = 'input window, operand 1']
    #allocation6 [shape = 's32[2]{0}', space=sflag, size = 0x8, scoped, tag = 'scoped memory for tpu_custom_call.1']
    #allocation7 [shape = 'u8[8192]{0}', space=vmem, size = 0x2000, scoped, tag = 'input window, operand 2, single buffered']
    #allocation8 [shape = 'u8[32768]{0}', space=vmem, size = 0x8000, scoped, tag = 'input window, operand 4, single buffered']
    #allocation9 [shape = 's32[1]{0}', space=sflag, size = 0x4, scoped, tag = 'scoped memory for tpu_custom_call.1']
    #allocation10 [shape = 'u8[65536]{0}', space=vmem, size = 0x10000, scoped, tag = 'input window, operand 5, single buffered']
    #allocation11 [shape = 'u8[32768]{0}', space=vmem, size = 0x8000, scoped, tag = 'input window, operand 6, single buffered']
    #allocation12 [shape = 's32[1]{0}', space=sflag, size = 0x4, scoped, tag = 'scoped memory for tpu_custom_call.1']
    #allocation13 [shape = 'u8[65536]{0}', space=vmem, size = 0x10000, scoped, tag = 'input window, operand 7, single buffered']
    #allocation14 [shape = 'u8[65536]{0}', space=vmem, size = 0x10000, scoped, tag = 'input window, operand 8, single buffered']
    #allocation15 [shape = 's32[1]{0}', space=sflag, size = 0x4, scoped, tag = 'scoped memory for tpu_custom_call.1']
    #allocation16 [shape = 'u8[16384]{0}', space=vmem, size = 0x4000, scoped, tag = 'output window, operand 0']
    %14 = vsyncpa [#allocation3], 0
    %s15 = scalar_lea.sflag [#allocation3], 1
    %16 = vsyncpa %s15, 0
    %17 = vsyncpa [#allocation6], 0
    %s18 = scalar_lea.sflag [#allocation6], 1
    %19 = vsyncpa %s18, 0
    %20 = vsyncpa [#allocation9], 0
    %21 = vsyncpa [#allocation12], 0
    %22 = vsyncpa [#allocation15], 0
    %23 = vsyncpa [#allocation4], 0
    %s24 = scalar_lea.sflag [#allocation4], 1
    %25 = vsyncpa %s24, 0
    loop: start=0, step=1, limit=4
    $region2: #{tpu_custom_call.1} parent=1 // loop_pre_header
      _
    $region3: #{tpu_custom_call.1} parent=1 // loop_header
      %s27 = sphi 0, %s31
      %p28 = scmp.ge.s32.totalorder %s27, 4
      %s37 = sphi 0, %s39
      %s40 = sphi 0, %s37
      %s41 = sphi 0, %s40
      %s57 = sphi 0, %s41
      %s63 = sphi 0, %s65
      %s66 = sphi 0, %s63
      %s67 = sphi 0, %s66
      %s83 = sphi 0, %s67
      %s87 = sphi 0, %s87
      %s89 = sphi 0, %s87
      %s90 = sphi 0, %s89
      %s104 = sphi 0, %s90
      %s108 = sphi 0, %s108
      %s110 = sphi 0, %s108
      %s111 = sphi 0, %s110
      %s125 = sphi 0, %s111
      %s129 = sphi 0, %s129
      %s131 = sphi 0, %s129
      %s132 = sphi 0, %s131
      %s146 = sphi 0, %s132
      %s150 = sphi 0, %s150
      %s152 = sphi 0, %s150
      %s153 = sphi 0, %s152
      %s167 = sphi 0, %s153
      %s171 = sphi 0, %s171
      %s173 = sphi 0, %s171
      %s174 = sphi 0, %s173
      %s188 = sphi 0, %s174
      %s192 = sphi 0, %s192
      %s194 = sphi 0, %s192
      %s195 = sphi 0, %s194
      %s209 = sphi 0, %s195
      %s213 = sphi 0, %s213
      %s215 = sphi 0, %s213
      %s216 = sphi 0, %s215
      %s230 = sphi 0, %s216
      %s236 = sphi 0, %s238
      %s239 = sphi 0, %s236
      %s240 = sphi 0, %s239
      %s256 = sphi 0, %s240
    $region4: #{tpu_custom_call.1} parent=1 // loop_header_branch
      %30 = sbr.rel (%p28) target = $region8
    $region5: #{tpu_custom_call.1} parent=1 // loop_body
      %s32 = ssub.s32 %s27, 1
      %s33 = ssub.s32 %s27, 2
      %s34 = sadd.s32 %s27, 1
      %s35 = ssub.s32 %s27, %s34
      %p36 = scmp.eq.s32.totalorder %s35, 0
      %s38 = sadd.s32 %s37, 1
      %s39 = scalar_select %p36, %s37, %s38
      %p42 = pneg %p36
      %p43 = scmp.eq.s32.totalorder %s27, 1
      %p44 = por %p42, %p43
      %p45 = scmp.ne.s32.totalorder %s37, %s40
      %p46 = scmp.eq.s32.totalorder %s27, 0
      %p47 = por %p45, %p46
      %p48 = scmp.ne.s32.totalorder %s37, %s40
      %p49 = scmp.eq.s32.totalorder %s32, 1
      %p50 = por %p48, %p49
      %p51 = scmp.ne.s32.totalorder %s40, %s41
      %p52 = scmp.eq.s32.totalorder %s32, 0
      %p53 = por %p51, %p52
      %p54 = scmp.ne.s32.totalorder %s40, %s41
      %p55 = scmp.eq.s32.totalorder %s33, 1
      %p56 = por %p54, %p55
      %p58 = scmp.ne.s32.totalorder %s41, %s57
      %p59 = scmp.eq.s32.totalorder %s33, 0
      %p60 = por %p58, %p59
      %s61 = ssub.s32 %s27, %s34
      %p62 = scmp.eq.s32.totalorder %s61, 0
      %s64 = sadd.s32 %s63, 1
      %s65 = scalar_select %p62, %s63, %s64
      %p68 = pneg %p62
      %p69 = scmp.eq.s32.totalorder %s27, 1
      %p70 = por %p68, %p69
      %p71 = scmp.ne.s32.totalorder %s63, %s66
      %p72 = scmp.eq.s32.totalorder %s27, 0
      %p73 = por %p71, %p72
      %p74 = scmp.ne.s32.totalorder %s63, %s66
      %p75 = scmp.eq.s32.totalorder %s32, 1
      %p76 = por %p74, %p75
      %p77 = scmp.ne.s32.totalorder %s66, %s67
      %p78 = scmp.eq.s32.totalorder %s32, 0
      %p79 = por %p77, %p78
      %p80 = scmp.ne.s32.totalorder %s66, %s67
      %p81 = scmp.eq.s32.totalorder %s33, 1
      %p82 = por %p80, %p81
      %p84 = scmp.ne.s32.totalorder %s67, %s83
      %p85 = scmp.eq.s32.totalorder %s33, 0
      %p86 = por %p84, %p85
      %s88 = sadd.s32 %s87, 1
      %p91 = scmp.eq.s32.totalorder %s27, 1
      %p92 = scmp.ne.s32.totalorder %s87, %s89
      %p93 = scmp.eq.s32.totalorder %s27, 0
      %p94 = por %p92, %p93
      %p95 = scmp.ne.s32.totalorder %s87, %s89
      %p96 = scmp.eq.s32.totalorder %s32, 1
      %p97 = por %p95, %p96
      %p98 = scmp.ne.s32.totalorder %s89, %s90
      %p99 = scmp.eq.s32.totalorder %s32, 0
      %p100 = por %p98, %p99
      %p101 = scmp.ne.s32.totalorder %s89, %s90
      %p102 = scmp.eq.s32.totalorder %s33, 1
      %p103 = por %p101, %p102
      %p105 = scmp.ne.s32.totalorder %s90, %s104
      %p106 = scmp.eq.s32.totalorder %s33, 0
      %p107 = por %p105, %p106
      %s109 = sadd.s32 %s108, 1
      %p112 = scmp.eq.s32.totalorder %s27, 1
      %p113 = scmp.ne.s32.totalorder %s108, %s110
      %p114 = scmp.eq.s32.totalorder %s27, 0
      %p115 = por %p113, %p114
      %p116 = scmp.ne.s32.totalorder %s108, %s110
      %p117 = scmp.eq.s32.totalorder %s32, 1
      %p118 = por %p116, %p117
      %p119 = scmp.ne.s32.totalorder %s110, %s111
      %p120 = scmp.eq.s32.totalorder %s32, 0
      %p121 = por %p119, %p120
      %p122 = scmp.ne.s32.totalorder %s110, %s111
      %p123 = scmp.eq.s32.totalorder %s33, 1
      %p124 = por %p122, %p123
      %p126 = scmp.ne.s32.totalorder %s111, %s125
      %p127 = scmp.eq.s32.totalorder %s33, 0
      %p128 = por %p126, %p127
      %s130 = sadd.s32 %s129, 1
      %p133 = scmp.eq.s32.totalorder %s27, 1
      %p134 = scmp.ne.s32.totalorder %s129, %s131
      %p135 = scmp.eq.s32.totalorder %s27, 0
      %p136 = por %p134, %p135
      %p137 = scmp.ne.s32.totalorder %s129, %s131
      %p138 = scmp.eq.s32.totalorder %s32, 1
      %p139 = por %p137, %p138
      %p140 = scmp.ne.s32.totalorder %s131, %s132
      %p141 = scmp.eq.s32.totalorder %s32, 0
      %p142 = por %p140, %p141
      %p143 = scmp.ne.s32.totalorder %s131, %s132
      %p144 = scmp.eq.s32.totalorder %s33, 1
      %p145 = por %p143, %p144
      %p147 = scmp.ne.s32.totalorder %s132, %s146
      %p148 = scmp.eq.s32.totalorder %s33, 0
      %p149 = por %p147, %p148
      %s151 = sadd.s32 %s150, 1
      %p154 = scmp.eq.s32.totalorder %s27, 1
      %p155 = scmp.ne.s32.totalorder %s150, %s152
      %p156 = scmp.eq.s32.totalorder %s27, 0
      %p157 = por %p155, %p156
      %p158 = scmp.ne.s32.totalorder %s150, %s152
      %p159 = scmp.eq.s32.totalorder %s32, 1
      %p160 = por %p158, %p159
      %p161 = scmp.ne.s32.totalorder %s152, %s153
      %p162 = scmp.eq.s32.totalorder %s32, 0
      %p163 = por %p161, %p162
      %p164 = scmp.ne.s32.totalorder %s152, %s153
      %p165 = scmp.eq.s32.totalorder %s33, 1
      %p166 = por %p164, %p165
      %p168 = scmp.ne.s32.totalorder %s153, %s167
      %p169 = scmp.eq.s32.totalorder %s33, 0
      %p170 = por %p168, %p169
      %s172 = sadd.s32 %s171, 1
      %p175 = scmp.eq.s32.totalorder %s27, 1
      %p176 = scmp.ne.s32.totalorder %s171, %s173
      %p177 = scmp.eq.s32.totalorder %s27, 0
      %p178 = por %p176, %p177
      %p179 = scmp.ne.s32.totalorder %s171, %s173
      %p180 = scmp.eq.s32.totalorder %s32, 1
      %p181 = por %p179, %p180
      %p182 = scmp.ne.s32.totalorder %s173, %s174
      %p183 = scmp.eq.s32.totalorder %s32, 0
      %p184 = por %p182, %p183
      %p185 = scmp.ne.s32.totalorder %s173, %s174
      %p186 = scmp.eq.s32.totalorder %s33, 1
      %p187 = por %p185, %p186
      %p189 = scmp.ne.s32.totalorder %s174, %s188
      %p190 = scmp.eq.s32.totalorder %s33, 0
      %p191 = por %p189, %p190
      %s193 = sadd.s32 %s192, 1
      %p196 = scmp.eq.s32.totalorder %s27, 1
      %p197 = scmp.ne.s32.totalorder %s192, %s194
      %p198 = scmp.eq.s32.totalorder %s27, 0
      %p199 = por %p197, %p198
      %p200 = scmp.ne.s32.totalorder %s192, %s194
      %p201 = scmp.eq.s32.totalorder %s32, 1
      %p202 = por %p200, %p201
      %p203 = scmp.ne.s32.totalorder %s194, %s195
      %p204 = scmp.eq.s32.totalorder %s32, 0
      %p205 = por %p203, %p204
      %p206 = scmp.ne.s32.totalorder %s194, %s195
      %p207 = scmp.eq.s32.totalorder %s33, 1
      %p208 = por %p206, %p207
      %p210 = scmp.ne.s32.totalorder %s195, %s209
      %p211 = scmp.eq.s32.totalorder %s33, 0
      %p212 = por %p210, %p211
      %s214 = sadd.s32 %s213, 1
      %p217 = scmp.eq.s32.totalorder %s27, 1
      %p218 = scmp.ne.s32.totalorder %s213, %s215
      %p219 = scmp.eq.s32.totalorder %s27, 0
      %p220 = por %p218, %p219
      %p221 = scmp.ne.s32.totalorder %s213, %s215
      %p222 = scmp.eq.s32.totalorder %s32, 1
      %p223 = por %p221, %p222
      %p224 = scmp.ne.s32.totalorder %s215, %s216
      %p225 = scmp.eq.s32.totalorder %s32, 0
      %p226 = por %p224, %p225
      %p227 = scmp.ne.s32.totalorder %s215, %s216
      %p228 = scmp.eq.s32.totalorder %s33, 1
      %p229 = por %p227, %p228
      %p231 = scmp.ne.s32.totalorder %s216, %s230
      %p232 = scmp.eq.s32.totalorder %s33, 0
      %p233 = por %p231, %p232
      %s234 = ssub.s32 %s27, %s34
      %p235 = scmp.eq.s32.totalorder %s234, 0
      %s237 = sadd.s32 %s236, 1
      %s238 = scalar_select %p235, %s236, %s237
      %p241 = pneg %p235
      %p242 = scmp.eq.s32.totalorder %s27, 1
      %p243 = por %p241, %p242
      %p244 = scmp.ne.s32.totalorder %s236, %s239
      %p245 = scmp.eq.s32.totalorder %s27, 0
      %p246 = por %p244, %p245
      %p247 = scmp.ne.s32.totalorder %s236, %s239
      %p248 = scmp.eq.s32.totalorder %s32, 1
      %p249 = por %p247, %p248
      %p250 = scmp.ne.s32.totalorder %s239, %s240
      %p251 = scmp.eq.s32.totalorder %s32, 0
      %p252 = por %p250, %p251
      %p253 = scmp.ne.s32.totalorder %s239, %s240
      %p254 = scmp.eq.s32.totalorder %s33, 1
      %p255 = por %p253, %p254
      %p257 = scmp.ne.s32.totalorder %s240, %s256
      %p258 = scmp.eq.s32.totalorder %s33, 0
      %p259 = por %p257, %p258
      %p260 = scmp.le.s32.totalorder 1, %s27
      %p261 = scmp.lt.s32.totalorder %s27, 3
      %p262 = pnand %p260, %p261
      %p263 = pneg %p262
      // Predicated region
      $region9: #{tpu_custom_call.1} parent=5 // pred_check
        _
      $region10: #{tpu_custom_call.1} parent=5 // pred_check_branch
        %265 = sbr.rel (%p262) target = $region12
      $region11: #{tpu_custom_call.1} parent=5 // pred_region
        %s266 = ssub.s32 %s27, 1
        // Predicated region
        $region13: #{tpu_custom_call.1} parent=11 // pred_check
          %p267 = pneg %p100
        $region14: #{tpu_custom_call.1} parent=11 // pred_check_branch
          %269 = sbr.rel (%p267) target = $region16
        $region15: #{tpu_custom_call.1} parent=11 // pred_region
          %271 = vsyncadd [#allocation6], 0
          %s272 = sshll.u32 %s2, 4
          %s273 = int_to_ptr.hbm [resolvable:$true] %s272
          %s274 = sshll.u32 [#allocation7], 4
          %s275 = int_to_ptr.vmem [resolvable:$true] %s274
          %280 = dma.hbm_to_vmem [thread:$0]  %s273, 256, %s275, [#allocation6], 128, 128, 8
        $region16: #{tpu_custom_call.1} parent=11 // pred_fallthru
          _
        // Predicated region
        $region17: #{tpu_custom_call.1} parent=11 // pred_check
          %p281 = pneg %p121
        $region18: #{tpu_custom_call.1} parent=11 // pred_check_branch
          %283 = sbr.rel (%p281) target = $region20
        $region19: #{tpu_custom_call.1} parent=11 // pred_region
          _
        $region20: #{tpu_custom_call.1} parent=11 // pred_fallthru
          _
        // Predicated region
        $region21: #{tpu_custom_call.1} parent=11 // pred_check
          %p284 = pneg %p142
        $region22: #{tpu_custom_call.1} parent=11 // pred_check_branch
          %286 = sbr.rel (%p284) target = $region24
        $region23: #{tpu_custom_call.1} parent=11 // pred_region
          %288 = vsyncadd [#allocation9], 0
          %s289 = sshll.u32 %s4, 4
          %s290 = int_to_ptr.hbm [resolvable:$true] %s289
          %s291 = sshll.u32 [#allocation8], 4
          %s292 = int_to_ptr.vmem [resolvable:$true] %s291
          %297 = dma.hbm_to_vmem [thread:$0]  %s290, 1024, %s292, [#allocation9], 64, 64, 4
        $region24: #{tpu_custom_call.1} parent=11 // pred_fallthru
          _
        // Predicated region
        $region25: #{tpu_custom_call.1} parent=11 // pred_check
          %p298 = pneg %p163
        $region26: #{tpu_custom_call.1} parent=11 // pred_check_branch
          %300 = sbr.rel (%p298) target = $region28
        $region27: #{tpu_custom_call.1} parent=11 // pred_region
          %302 = vsyncadd [#allocation9], 0
          %s303 = sshll.u32 %s5, 4
          %s304 = int_to_ptr.hbm [resolvable:$true] %s303
          %s305 = sshll.u32 [#allocation10], 4
          %s306 = int_to_ptr.vmem [resolvable:$true] %s305
          %311 = dma.hbm_to_vmem [thread:$0]  %s304, 2048, %s306, [#allocation9], 128, 128, 8
        $region28: #{tpu_custom_call.1} parent=11 // pred_fallthru
          _
        // Predicated region
        $region29: #{tpu_custom_call.1} parent=11 // pred_check
          %p312 = pneg %p184
        $region30: #{tpu_custom_call.1} parent=11 // pred_check_branch
          %314 = sbr.rel (%p312) target = $region32
        $region31: #{tpu_custom_call.1} parent=11 // pred_region
          %316 = vsyncadd [#allocation12], 0
          %s317 = sshll.u32 %s6, 4
          %s318 = int_to_ptr.hbm [resolvable:$true] %s317
          %s319 = sshll.u32 [#allocation11], 4
          %s320 = int_to_ptr.vmem [resolvable:$true] %s319
          %325 = dma.hbm_to_vmem [thread:$0]  %s318, 1024, %s320, [#allocation12], 64, 64, 4
        $region32: #{tpu_custom_call.1} parent=11 // pred_fallthru
          _
        // Predicated region
        $region33: #{tpu_custom_call.1} parent=11 // pred_check
          %p326 = pneg %p205
        $region34: #{tpu_custom_call.1} parent=11 // pred_check_branch
          %328 = sbr.rel (%p326) target = $region36
        $region35: #{tpu_custom_call.1} parent=11 // pred_region
          %330 = vsyncadd [#allocation12], 0
          %s331 = sshll.u32 %s7, 4
          %s332 = int_to_ptr.hbm [resolvable:$true] %s331
          %s333 = sshll.u32 [#allocation13], 4
          %s334 = int_to_ptr.vmem [resolvable:$true] %s333
          %339 = dma.hbm_to_vmem [thread:$0]  %s332, 2048, %s334, [#allocation12], 128, 128, 8
        $region36: #{tpu_custom_call.1} parent=11 // pred_fallthru
          _
        // Predicated region
        $region37: #{tpu_custom_call.1} parent=11 // pred_check
          %p340 = pneg %p226
        $region38: #{tpu_custom_call.1} parent=11 // pred_check_branch
          %342 = sbr.rel (%p340) target = $region40
        $region39: #{tpu_custom_call.1} parent=11 // pred_region
          %344 = vsyncadd [#allocation15], 0
          %s345 = sshll.u32 %s8, 4
          %s346 = int_to_ptr.hbm [resolvable:$true] %s345
          %s347 = sshll.u32 [#allocation14], 4
          %s348 = int_to_ptr.vmem [resolvable:$true] %s347
          %353 = dma.hbm_to_vmem [thread:$0]  %s346, 2048, %s348, [#allocation15], 64, 64, 4
        $region40: #{tpu_custom_call.1} parent=11 // pred_fallthru
          _
      $region12: #{tpu_custom_call.1} parent=5 // pred_fallthru
        _
      %p354 = scmp.lt.s32.totalorder %s27, 2
      // Predicated region
      $region41: #{tpu_custom_call.1} parent=5 // pred_check
        %p355 = pneg %p354
      $region42: #{tpu_custom_call.1} parent=5 // pred_check_branch
        %357 = sbr.rel (%p355) target = $region44
      $region43: #{tpu_custom_call.1} parent=5 // pred_region
        // Predicated region
        $region45: #{tpu_custom_call.1} parent=43 // pred_check
          %p358 = pneg %p47
        $region46: #{tpu_custom_call.1} parent=43 // pred_check_branch
          %360 = sbr.rel (%p358) target = $region48
        $region47: #{tpu_custom_call.1} parent=43 // pred_region
          %s361 = sand.u32 %s37, 1
          %s362 = scalar_lea.sflag [#allocation3], %s361
          %s363 = sand.u32 %s37, 1
          %s364 = smul.addr %s363, 16
          %s365 = scalar_lea.vmem [#allocation2], %s364
          %367 = vsyncadd %s362, 0
          %s368 = smul.addr %s27, 2
          %s369 = smul.addr %s368, 8
          %s370 = scalar_lea.hbm %s0, %s369
          %s371 = sshll.u32 %s370, 4
          %s372 = int_to_ptr.hbm [resolvable:$true] %s371
          %s373 = sshll.u32 %s365, 4
          %s374 = int_to_ptr.vmem [resolvable:$true] %s373
          %379 = dma.hbm_to_vmem [thread:$0]  %s372, 256, %s374, %s362, 128, 128, 8
        $region48: #{tpu_custom_call.1} parent=43 // pred_fallthru
          _
        // Predicated region
        $region49: #{tpu_custom_call.1} parent=43 // pred_check
          %p380 = pneg %p73
        $region50: #{tpu_custom_call.1} parent=43 // pred_check_branch
          %382 = sbr.rel (%p380) target = $region52
        $region51: #{tpu_custom_call.1} parent=43 // pred_region
          %s383 = sand.u32 %s27, 1
          %s384 = scalar_lea.sflag [#allocation6], %s383
          %s385 = sand.u32 %s63, 1
          %s386 = smul.addr %s385, 64
          %s387 = scalar_lea.vmem [#allocation5], %s386
          %389 = vsyncadd %s384, 0
          %s390 = smul.addr %s27, 16
          %s391 = smul.addr %s390, 4
          %s392 = scalar_lea.hbm %s1, %s391
          %s393 = sshll.u32 %s392, 4
          %s394 = int_to_ptr.hbm [resolvable:$true] %s393
          %s395 = sshll.u32 %s387, 4
          %s396 = int_to_ptr.vmem [resolvable:$true] %s395
          %401 = dma.hbm_to_vmem [thread:$0]  %s394, 1024, %s396, %s384, 64, 64, 4
        $region52: #{tpu_custom_call.1} parent=43 // pred_fallthru
          _
      $region44: #{tpu_custom_call.1} parent=5 // pred_fallthru
        _
      %p402 = scmp.le.s32.totalorder 1, %s27
      %p403 = scmp.lt.s32.totalorder %s27, 3
      %p404 = pnand %p402, %p403
      %p405 = pneg %p404
      // Predicated region
      $region53: #{tpu_custom_call.1} parent=5 // pred_check
        _
      $region54: #{tpu_custom_call.1} parent=5 // pred_check_branch
        %407 = sbr.rel (%p404) target = $region56
      $region55: #{tpu_custom_call.1} parent=5 // pred_region
        %s408 = ssub.s32 %s27, 1
        %s409 = sand.u32 %s40, 1
        %s410 = scalar_lea.sflag [#allocation3], %s409
        %s411 = sand.u32 %s40, 1
        %s412 = smul.addr %s411, 16
        %s413 = scalar_lea.vmem [#allocation2], %s412
        // Predicated region
        $region57: #{tpu_custom_call.1} parent=55 // pred_check
          %p414 = pneg %p53
        $region58: #{tpu_custom_call.1} parent=55 // pred_check_branch
          %416 = sbr.rel (%p414) target = $region60
        $region59: #{tpu_custom_call.1} parent=55 // pred_region
          %418 = dma.done %s410, 256
        $region60: #{tpu_custom_call.1} parent=55 // pred_fallthru
          _
        %s419 = sand.u32 %s32, 1
        %s420 = scalar_lea.sflag [#allocation6], %s419
        %s421 = sand.u32 %s66, 1
        %s422 = smul.addr %s421, 64
        %s423 = scalar_lea.vmem [#allocation5], %s422
        // Predicated region
        $region61: #{tpu_custom_call.1} parent=55 // pred_check
          %p424 = pneg %p79
        $region62: #{tpu_custom_call.1} parent=55 // pred_check_branch
          %426 = sbr.rel (%p424) target = $region64
        $region63: #{tpu_custom_call.1} parent=55 // pred_region
          %428 = dma.done %s420, 1024
        $region64: #{tpu_custom_call.1} parent=55 // pred_fallthru
          _
        // Predicated region
        $region65: #{tpu_custom_call.1} parent=55 // pred_check
          %p429 = pneg %p100
        $region66: #{tpu_custom_call.1} parent=55 // pred_check_branch
          %431 = sbr.rel (%p429) target = $region68
        $region67: #{tpu_custom_call.1} parent=55 // pred_region
          %433 = dma.done [#allocation6], 256
        $region68: #{tpu_custom_call.1} parent=55 // pred_fallthru
          _
        // Predicated region
        $region69: #{tpu_custom_call.1} parent=55 // pred_check
          %p434 = pneg %p142
        $region70: #{tpu_custom_call.1} parent=55 // pred_check_branch
          %436 = sbr.rel (%p434) target = $region72
        $region71: #{tpu_custom_call.1} parent=55 // pred_region
          %438 = dma.done [#allocation9], 1024
        $region72: #{tpu_custom_call.1} parent=55 // pred_fallthru
          _
        // Predicated region
        $region73: #{tpu_custom_call.1} parent=55 // pred_check
          %p439 = pneg %p163
        $region74: #{tpu_custom_call.1} parent=55 // pred_check_branch
          %441 = sbr.rel (%p439) target = $region76
        $region75: #{tpu_custom_call.1} parent=55 // pred_region
          %443 = dma.done [#allocation9], 2048
        $region76: #{tpu_custom_call.1} parent=55 // pred_fallthru
          _
        // Predicated region
        $region77: #{tpu_custom_call.1} parent=55 // pred_check
          %p444 = pneg %p184
        $region78: #{tpu_custom_call.1} parent=55 // pred_check_branch
          %446 = sbr.rel (%p444) target = $region80
        $region79: #{tpu_custom_call.1} parent=55 // pred_region
          %448 = dma.done [#allocation12], 1024
        $region80: #{tpu_custom_call.1} parent=55 // pred_fallthru
          _
        // Predicated region
        $region81: #{tpu_custom_call.1} parent=55 // pred_check
          %p449 = pneg %p205
        $region82: #{tpu_custom_call.1} parent=55 // pred_check_branch
          %451 = sbr.rel (%p449) target = $region84
        $region83: #{tpu_custom_call.1} parent=55 // pred_region
          %453 = dma.done [#allocation12], 2048
        $region84: #{tpu_custom_call.1} parent=55 // pred_fallthru
          _
        // Predicated region
        $region85: #{tpu_custom_call.1} parent=55 // pred_check
          %p454 = pneg %p226
        $region86: #{tpu_custom_call.1} parent=55 // pred_check_branch
          %456 = sbr.rel (%p454) target = $region88
        $region87: #{tpu_custom_call.1} parent=55 // pred_region
          %458 = dma.done [#allocation15], 2048
        $region88: #{tpu_custom_call.1} parent=55 // pred_fallthru
          _
        %s459 = sand.u32 %s40, 1
        %s460 = scalar_lea.sflag [#allocation3], %s459
        %s461 = sand.u32 %s40, 1
        %s462 = smul.addr %s461, 16
        %s463 = scalar_lea.vmem [#allocation2], %s462
        %p464 = pneg %p53
        %p465 = pneg %p50
        %s466 = sand.u32 %s32, 1
        %s467 = scalar_lea.sflag [#allocation6], %s466
        %s468 = sand.u32 %s66, 1
        %s469 = smul.addr %s468, 64
        %s470 = scalar_lea.vmem [#allocation5], %s469
        %p471 = pneg %p79
        %p472 = pneg %p76
        %p473 = pneg %p100
        %p474 = pneg %p97
        %p475 = pneg %p121
        %p476 = pneg %p118
        %p477 = pneg %p142
        %p478 = pneg %p139
        %p479 = pneg %p163
        %p480 = pneg %p160
        %p481 = pneg %p184
        %p482 = pneg %p181
        %p483 = pneg %p205
        %p484 = pneg %p202
        %p485 = pneg %p226
        %p486 = pneg %p223
        %p487 = pneg %p252
        %p488 = pneg %p249
        %s489 = sand.u32 %s239, 1
        %s490 = scalar_lea.sflag [#allocation4], %s489
        %s491 = sand.u32 %s239, 1
        %s492 = smul.addr %s491, 16
        %s493 = scalar_lea.vmem [#allocation16], %s492
        %v495 = vld [vmem:[#allocation7] sm:$0xff]
        %v496 = vld [vmem:[#allocation7 + $0x8] sm:$0x1]
        %v497 = vld [vmem:[%s413] sm:$0xff]
        %v498 = vld [vmem:[%s413 + $0x8] sm:$0xff]
        %v499 = vld [vmem:[%s423] sm:$0xf]
        %v500 = vld [vmem:[%s423 + $0x4] sm:$0xf]
        %v501 = vld [vmem:[%s423 + $0x8] sm:$0xf]
        %v502 = vld [vmem:[%s423 + $0xc] sm:$0xf]
        %v503 = vld [vmem:[%s423 + $0x10] sm:$0xf]
        %v504 = vld [vmem:[%s423 + $0x14] sm:$0xf]
        %v505 = vld [vmem:[%s423 + $0x18] sm:$0xf]
        %v506 = vld [vmem:[%s423 + $0x1c] sm:$0xf]
        %v507 = vld [vmem:[%s423 + $0x20] sm:$0xf]
        %v508 = vld [vmem:[%s423 + $0x24] sm:$0xf]
        %v509 = vld [vmem:[%s423 + $0x28] sm:$0xf]
        %v510 = vld [vmem:[%s423 + $0x2c] sm:$0xf]
        %v511 = vld [vmem:[%s423 + $0x30] sm:$0xf]
        %v512 = vld [vmem:[%s423 + $0x34] sm:$0xf]
        %v513 = vld [vmem:[%s423 + $0x38] sm:$0xf]
        %v514 = vld [vmem:[%s423 + $0x3c] sm:$0xf]
        %515 = vadd.xlane.f32.xlu0 %v497
        %v516 = vpop.xlane.xlu0 %515
        %517 = vadd.xlane.f32.xlu0 %v498
        %v518 = vpop.xlane.xlu0 %517
        %v519 = vrcp.pop 128.0
        %v520 = vmul.f32 128.0, %v519
        %v521 = vsub.f32 1.0, %v520
        %v522 = vmul.f32 %v519, %v521
        %v523 = vadd.f32 %v519, %v522
        %vm524 = vweird.f32 %v519
        %v525 = vsel %vm524, %v519, %v523
        %v526 = vmul.f32 %v516, %v525
        %v527 = vmul.f32 %v518, %v525
        %v528 = vsub.f32 %v497, %v526
        %v529 = vsub.f32 %v498, %v527
        %v530 = vmul.f32 %v528, %v528
        %v531 = vmul.f32 %v529, %v529
        %532 = vadd.xlane.f32.xlu0 %v530
        %v533 = vpop.xlane.xlu0 %532
        %534 = vadd.xlane.f32.xlu0 %v531
        %v535 = vpop.xlane.xlu0 %534
        %v536 = vmul.f32 %v533, %v525
        %v537 = vmul.f32 %v535, %v525
        %v538 = vadd.f32 %v536, 1e-05
        %v539 = vadd.f32 %v537, 1e-05
        %v540 = vrsqrt.pop %v538
        %v541 = vmul.f32 %v540, %v538
        %v542 = vmul.f32 %v541, %v540
        %v543 = vmul.f32 0.5, %v542
        %v544 = vsub.f32 1.5, %v543
        %v545 = vmul.f32 %v540, %v544
        %vm546 = vweird.f32 %v538
        %vm547 = vweird.f32 %v540
        %vm548 = vmor %vm546, %vm547
        %v549 = vsel %vm548, %v540, %v545
        %v550 = vrsqrt.pop %v539
        %v551 = vmul.f32 %v550, %v539
        %v552 = vmul.f32 %v551, %v550
        %v553 = vmul.f32 0.5, %v552
        %v554 = vsub.f32 1.5, %v553
        %v555 = vmul.f32 %v550, %v554
        %vm556 = vweird.f32 %v539
        %vm557 = vweird.f32 %v550
        %vm558 = vmor %vm556, %vm557
        %v559 = vsel %vm558, %v550, %v555
        %v560 = vmul.f32 %v528, %v549
        %v561 = vmul.f32 %v529, %v559
        %v562 = vperm.slane %v495, 0
        %v563 = vmul.f32 %v560, %v562
        %v564 = vmul.f32 %v561, %v562
        %v565 = vperm.slane %v495, 1
        %v566 = vadd.f32 %v563, %v565
        %v567 = vadd.f32 %v564, %v565
        %v568 = vpack.c.bf16 %v567, %v566
        %v569 = vld [vmem:[#allocation8] sm:$0xf]
        %v570 = vld [vmem:[#allocation8 + $0x4] sm:$0xf]
        %v571 = vld [vmem:[#allocation8 + $0x8] sm:$0xf]
        %v572 = vld [vmem:[#allocation8 + $0xc] sm:$0xf]
        %v573 = vld [vmem:[#allocation8 + $0x10] sm:$0xf]
        %v574 = vld [vmem:[#allocation8 + $0x14] sm:$0xf]
        %v575 = vld [vmem:[#allocation8 + $0x18] sm:$0xf]
        %v576 = vld [vmem:[#allocation8 + $0x1c] sm:$0xf]
        %v577 = vld [vmem:[#allocation8 + $0x20] sm:$0xf]
        %v578 = vld [vmem:[#allocation8 + $0x24] sm:$0xf]
        %v579 = vld [vmem:[#allocation8 + $0x28] sm:$0xf]
        %v580 = vld [vmem:[#allocation8 + $0x2c] sm:$0xf]
        %v581 = vld [vmem:[#allocation8 + $0x30] sm:$0xf]
        %v582 = vld [vmem:[#allocation8 + $0x34] sm:$0xf]
        %v583 = vld [vmem:[#allocation8 + $0x38] sm:$0xf]
        %v584 = vld [vmem:[#allocation8 + $0x3c] sm:$0xf]
        %v585 = vperm.slane %v495, 2
        %v602 = vunpack.c.l.b16 %v569
        %v603 = vunpack.c.l.b16 %v570
        %v604 = vunpack.c.l.b16 %v571
        %v605 = vunpack.c.l.b16 %v572
        %v606 = vunpack.c.l.b16 %v573
        %v607 = vunpack.c.l.b16 %v574
        %v608 = vunpack.c.l.b16 %v575
        %v609 = vunpack.c.l.b16 %v576
        %v610 = vunpack.c.l.b16 %v577
        %v611 = vunpack.c.l.b16 %v578
        %v612 = vunpack.c.l.b16 %v579
        %v613 = vunpack.c.l.b16 %v580
        %v614 = vunpack.c.l.b16 %v581
        %v615 = vunpack.c.l.b16 %v582
        %v616 = vunpack.c.l.b16 %v583
        %v617 = vunpack.c.l.b16 %v584
        %v618 = vpack.c.b16 %v603, %v602
        %v619 = vpack.c.b16 %v605, %v604
        %v620 = vpack.c.b16 %v607, %v606
        %v621 = vpack.c.b16 %v609, %v608
        %v622 = vpack.c.b16 %v611, %v610
        %v623 = vpack.c.b16 %v613, %v612
        %v624 = vpack.c.b16 %v615, %v614
        %v625 = vpack.c.b16 %v617, %v616
        %634 = vmatpush.bf16.msra.mxu0 %v625
        %635 = vmatpush.bf16.msra.mxu0 %v624
        %636 = vmatpush.bf16.msra.mxu0 %v623
        %637 = vmatpush.bf16.msra.mxu0 %v622
        %638 = vmatpush.bf16.msra.mxu0 %v621
        %639 = vmatpush.bf16.msra.mxu0 %v620
        %640 = vmatpush.bf16.msra.mxu0 %v619
        %641 = vmatpush.bf16.msra.mxu0 %v618
        %642 = vmatmul.bf16.gmra.mxu0 %v568
        %v643 = vpop.f32.mrf.mxu0
        %v644 = vadd.f32 %v585, %v643
        %v645 = vpop.f32.mrf.mxu0
        %v646 = vadd.f32 %v585, %v645
        %647 = vdwg.mxu0
        %v648 = vpack.c.bf16 %v644, %v644
        %v649 = vpack.c.bf16 %v646, %v646
        %v650 = vld [vmem:[#allocation10] sm:$0xff]
        %v651 = vld [vmem:[#allocation10 + $0x8] sm:$0xff]
        %v652 = vld [vmem:[#allocation10 + $0x10] sm:$0xff]
        %v653 = vld [vmem:[#allocation10 + $0x18] sm:$0xff]
        %v654 = vld [vmem:[#allocation10 + $0x20] sm:$0xff]
        %v655 = vld [vmem:[#allocation10 + $0x28] sm:$0xff]
        %v656 = vld [vmem:[#allocation10 + $0x30] sm:$0xff]
        %v657 = vld [vmem:[#allocation10 + $0x38] sm:$0xff]
        %v658 = vld [vmem:[#allocation10 + $0x40] sm:$0xff]
        %v659 = vld [vmem:[#allocation10 + $0x48] sm:$0xff]
        %v660 = vld [vmem:[#allocation10 + $0x50] sm:$0xff]
        %v661 = vld [vmem:[#allocation10 + $0x58] sm:$0xff]
        %v662 = vld [vmem:[#allocation10 + $0x60] sm:$0xff]
        %v663 = vld [vmem:[#allocation10 + $0x68] sm:$0xff]
        %v664 = vld [vmem:[#allocation10 + $0x70] sm:$0xff]
        %v665 = vld [vmem:[#allocation10 + $0x78] sm:$0xff]
        %v682 = vunpack.c.l.b16 %v499
        %v683 = vunpack.c.l.b16 %v500
        %v684 = vunpack.c.l.b16 %v501
        %v685 = vunpack.c.l.b16 %v502
        %v686 = vunpack.c.l.b16 %v503
        %v687 = vunpack.c.l.b16 %v504
        %v688 = vunpack.c.l.b16 %v505
        %v689 = vunpack.c.l.b16 %v506
        %v690 = vunpack.c.l.b16 %v507
        %v691 = vunpack.c.l.b16 %v508
        %v692 = vunpack.c.l.b16 %v509
        %v693 = vunpack.c.l.b16 %v510
        %v694 = vunpack.c.l.b16 %v511
        %v695 = vunpack.c.l.b16 %v512
        %v696 = vunpack.c.l.b16 %v513
        %v697 = vunpack.c.l.b16 %v514
        %v698 = vpack.c.b16 %v683, %v682
        %v699 = vpack.c.b16 %v685, %v684
        %v700 = vpack.c.b16 %v687, %v686
        %v701 = vpack.c.b16 %v689, %v688
        %v702 = vpack.c.b16 %v691, %v690
        %v703 = vpack.c.b16 %v693, %v692
        %v704 = vpack.c.b16 %v695, %v694
        %v705 = vpack.c.b16 %v697, %v696
        %v730 = vunpack.c.l.b16 %v650
        %v731 = vunpack.c.h.b16 %v650
        %v732 = vunpack.c.l.b16 %v651
        %v733 = vunpack.c.h.b16 %v651
        %v734 = vunpack.c.l.b16 %v652
        %v735 = vunpack.c.h.b16 %v652
        %v736 = vunpack.c.l.b16 %v653
        %v737 = vunpack.c.h.b16 %v653
        %v738 = vunpack.c.l.b16 %v654
        %v739 = vunpack.c.h.b16 %v654
        %v740 = vunpack.c.l.b16 %v655
        %v741 = vunpack.c.h.b16 %v655
        %v742 = vunpack.c.l.b16 %v656
        %v743 = vunpack.c.h.b16 %v656
        %v744 = vunpack.c.l.b16 %v657
        %v745 = vunpack.c.h.b16 %v657
        %v746 = vunpack.c.l.b16 %v658
        %v747 = vunpack.c.h.b16 %v658
        %v748 = vunpack.c.l.b16 %v659
        %v749 = vunpack.c.h.b16 %v659
        %v750 = vunpack.c.l.b16 %v660
        %v751 = vunpack.c.h.b16 %v660
        %v752 = vunpack.c.l.b16 %v661
        %v753 = vunpack.c.h.b16 %v661
        %v754 = vunpack.c.l.b16 %v662
        %v755 = vunpack.c.h.b16 %v662
        %v756 = vunpack.c.l.b16 %v663
        %v757 = vunpack.c.h.b16 %v663
        %v758 = vunpack.c.l.b16 %v664
        %v759 = vunpack.c.h.b16 %v664
        %v760 = vunpack.c.l.b16 %v665
        %v761 = vunpack.c.h.b16 %v665
        %v762 = vpack.c.b16 %v732, %v730
        %v763 = vpack.c.b16 %v733, %v731
        %v764 = vpack.c.b16 %v736, %v734
        %v765 = vpack.c.b16 %v737, %v735
        %v766 = vpack.c.b16 %v740, %v738
        %v767 = vpack.c.b16 %v741, %v739
        %v768 = vpack.c.b16 %v744, %v742
        %v769 = vpack.c.b16 %v745, %v743
        %v770 = vpack.c.b16 %v748, %v746
        %v771 = vpack.c.b16 %v749, %v747
        %v772 = vpack.c.b16 %v752, %v750
        %v773 = vpack.c.b16 %v753, %v751
        %v774 = vpack.c.b16 %v756, %v754
        %v775 = vpack.c.b16 %v757, %v755
        %v776 = vpack.c.b16 %v760, %v758
        %v777 = vpack.c.b16 %v761, %v759
        %794 = vmatpush.bf16.msra.mxu0 %v776
        %795 = vmatpush.bf16.msra.mxu0 %v774
        %796 = vmatpush.bf16.msra.mxu0 %v772
        %797 = vmatpush.bf16.msra.mxu0 %v770
        %798 = vmatpush.bf16.msra.mxu0 %v768
        %799 = vmatpush.bf16.msra.mxu0 %v766
        %800 = vmatpush.bf16.msra.mxu0 %v764
        %801 = vmatpush.bf16.msra.mxu0 %v762
        %802 = vmatmul.bf16.gmra.mxu0 %v698
        %v803 = vpop.f32.mrf.mxu0
        %v804 = vadd.f32 0.0, %v803
        %v805 = vpop.f32.mrf.mxu0
        %v806 = vadd.f32 0.0, %v805
        %807 = vmatmul.bf16.gmra.mxu0 %v699
        %v808 = vpop.f32.mrf.mxu0
        %v809 = vadd.f32 0.0, %v808
        %v810 = vpop.f32.mrf.mxu0
        %v811 = vadd.f32 0.0, %v810
        %812 = vmatmul.bf16.gmra.mxu0 %v700
        %v813 = vpop.f32.mrf.mxu0
        %v814 = vadd.f32 0.0, %v813
        %v815 = vpop.f32.mrf.mxu0
        %v816 = vadd.f32 0.0, %v815
        %817 = vmatmul.bf16.gmra.mxu0 %v701
        %v818 = vpop.f32.mrf.mxu0
        %v819 = vadd.f32 0.0, %v818
        %v820 = vpop.f32.mrf.mxu0
        %v821 = vadd.f32 0.0, %v820
        %822 = vmatmul.bf16.gmra.mxu0 %v702
        %v823 = vpop.f32.mrf.mxu0
        %v824 = vadd.f32 0.0, %v823
        %v825 = vpop.f32.mrf.mxu0
        %v826 = vadd.f32 0.0, %v825
        %827 = vmatmul.bf16.gmra.mxu0 %v703
        %v828 = vpop.f32.mrf.mxu0
        %v829 = vadd.f32 0.0, %v828
        %v830 = vpop.f32.mrf.mxu0
        %v831 = vadd.f32 0.0, %v830
        %832 = vmatmul.bf16.gmra.mxu0 %v704
        %v833 = vpop.f32.mrf.mxu0
        %v834 = vadd.f32 0.0, %v833
        %v835 = vpop.f32.mrf.mxu0
        %v836 = vadd.f32 0.0, %v835
        %837 = vmatmul.bf16.gmra.mxu0 %v705
        %v838 = vpop.f32.mrf.mxu0
        %v839 = vadd.f32 0.0, %v838
        %v840 = vpop.f32.mrf.mxu0
        %v841 = vadd.f32 0.0, %v840
        %842 = vdwg.mxu0
        %843 = vmatpush.bf16.msra.mxu0 %v777
        %844 = vmatpush.bf16.msra.mxu0 %v775
        %845 = vmatpush.bf16.msra.mxu0 %v773
        %846 = vmatpush.bf16.msra.mxu0 %v771
        %847 = vmatpush.bf16.msra.mxu0 %v769
        %848 = vmatpush.bf16.msra.mxu0 %v767
        %849 = vmatpush.bf16.msra.mxu0 %v765
        %850 = vmatpush.bf16.msra.mxu0 %v763
        %851 = vmatmul.bf16.gmra.mxu0 %v698
        %v852 = vpop.f32.mrf.mxu0
        %v853 = vadd.f32 0.0, %v852
        %v854 = vpop.f32.mrf.mxu0
        %v855 = vadd.f32 0.0, %v854
        %856 = vmatmul.bf16.gmra.mxu0 %v699
        %v857 = vpop.f32.mrf.mxu0
        %v858 = vadd.f32 0.0, %v857
        %v859 = vpop.f32.mrf.mxu0
        %v860 = vadd.f32 0.0, %v859
        %861 = vmatmul.bf16.gmra.mxu0 %v700
        %v862 = vpop.f32.mrf.mxu0
        %v863 = vadd.f32 0.0, %v862
        %v864 = vpop.f32.mrf.mxu0
        %v865 = vadd.f32 0.0, %v864
        %866 = vmatmul.bf16.gmra.mxu0 %v701
        %v867 = vpop.f32.mrf.mxu0
        %v868 = vadd.f32 0.0, %v867
        %v869 = vpop.f32.mrf.mxu0
        %v870 = vadd.f32 0.0, %v869
        %871 = vmatmul.bf16.gmra.mxu0 %v702
        %v872 = vpop.f32.mrf.mxu0
        %v873 = vadd.f32 0.0, %v872
        %v874 = vpop.f32.mrf.mxu0
        %v875 = vadd.f32 0.0, %v874
        %876 = vmatmul.bf16.gmra.mxu0 %v703
        %v877 = vpop.f32.mrf.mxu0
        %v878 = vadd.f32 0.0, %v877
        %v879 = vpop.f32.mrf.mxu0
        %v880 = vadd.f32 0.0, %v879
        %881 = vmatmul.bf16.gmra.mxu0 %v704
        %v882 = vpop.f32.mrf.mxu0
        %v883 = vadd.f32 0.0, %v882
        %v884 = vpop.f32.mrf.mxu0
        %v885 = vadd.f32 0.0, %v884
        %886 = vmatmul.bf16.gmra.mxu0 %v705
        %v887 = vpop.f32.mrf.mxu0
        %v888 = vadd.f32 0.0, %v887
        %v889 = vpop.f32.mrf.mxu0
        %v890 = vadd.f32 0.0, %v889
        %891 = vdwg.mxu0
        %v892 = vperm.slane %v495, 3
        %v893 = vadd.f32 %v804, %v892
        %v894 = vadd.f32 %v806, %v892
        %v895 = vadd.f32 %v809, %v892
        %v896 = vadd.f32 %v811, %v892
        %v897 = vadd.f32 %v814, %v892
        %v898 = vadd.f32 %v816, %v892
        %v899 = vadd.f32 %v819, %v892
        %v900 = vadd.f32 %v821, %v892
        %v901 = vadd.f32 %v824, %v892
        %v902 = vadd.f32 %v826, %v892
        %v903 = vadd.f32 %v829, %v892
        %v904 = vadd.f32 %v831, %v892
        %v905 = vadd.f32 %v834, %v892
        %v906 = vadd.f32 %v836, %v892
        %v907 = vadd.f32 %v839, %v892
        %v908 = vadd.f32 %v841, %v892
        %v909 = vpack.c.bf16 %v893, %v893
        %v910 = vpack.c.bf16 %v894, %v894
        %v911 = vpack.c.bf16 %v895, %v895
        %v912 = vpack.c.bf16 %v896, %v896
        %v913 = vpack.c.bf16 %v897, %v897
        %v914 = vpack.c.bf16 %v898, %v898
        %v915 = vpack.c.bf16 %v899, %v899
        %v916 = vpack.c.bf16 %v900, %v900
        %v917 = vpack.c.bf16 %v901, %v901
        %v918 = vpack.c.bf16 %v902, %v902
        %v919 = vpack.c.bf16 %v903, %v903
        %v920 = vpack.c.bf16 %v904, %v904
        %v921 = vpack.c.bf16 %v905, %v905
        %v922 = vpack.c.bf16 %v906, %v906
        %v923 = vpack.c.bf16 %v907, %v907
        %v924 = vpack.c.bf16 %v908, %v908
        %v925 = vperm.slane %v495, 4
        %v926 = vadd.f32 %v853, %v925
        %v927 = vadd.f32 %v855, %v925
        %v928 = vadd.f32 %v858, %v925
        %v929 = vadd.f32 %v860, %v925
        %v930 = vadd.f32 %v863, %v925
        %v931 = vadd.f32 %v865, %v925
        %v932 = vadd.f32 %v868, %v925
        %v933 = vadd.f32 %v870, %v925
        %v934 = vadd.f32 %v873, %v925
        %v935 = vadd.f32 %v875, %v925
        %v936 = vadd.f32 %v878, %v925
        %v937 = vadd.f32 %v880, %v925
        %v938 = vadd.f32 %v883, %v925
        %v939 = vadd.f32 %v885, %v925
        %v940 = vadd.f32 %v888, %v925
        %v941 = vadd.f32 %v890, %v925
        %v942 = vpack.c.bf16 %v926, %v926
        %v943 = vpack.c.bf16 %v927, %v927
        %v944 = vpack.c.bf16 %v928, %v928
        %v945 = vpack.c.bf16 %v929, %v929
        %v946 = vpack.c.bf16 %v930, %v930
        %v947 = vpack.c.bf16 %v931, %v931
        %v948 = vpack.c.bf16 %v932, %v932
        %v949 = vpack.c.bf16 %v933, %v933
        %v950 = vpack.c.bf16 %v934, %v934
        %v951 = vpack.c.bf16 %v935, %v935
        %v952 = vpack.c.bf16 %v936, %v936
        %v953 = vpack.c.bf16 %v937, %v937
        %v954 = vpack.c.bf16 %v938, %v938
        %v955 = vpack.c.bf16 %v939, %v939
        %v956 = vpack.c.bf16 %v940, %v940
        %v957 = vpack.c.bf16 %v941, %v941
        %v958 = vlaneseq
        %v959 = vand.u32 %v958, 127
        %vm960 = vcmp.lt.s32.totalorder %v959, 32
        %v961 = vsel %vm960, 0.0, -1e+30
        %v964 = vunpack.c.l.b16 %v648
        %v965 = vunpack.c.l.b16 %v649
        %v966 = vpack.c.b16 %v965, %v964
        %v983 = vunpack.c.l.b16 %v909
        %v984 = vunpack.c.l.b16 %v910
        %v985 = vunpack.c.l.b16 %v911
        %v986 = vunpack.c.l.b16 %v912
        %v987 = vunpack.c.l.b16 %v913
        %v988 = vunpack.c.l.b16 %v914
        %v989 = vunpack.c.l.b16 %v915
        %v990 = vunpack.c.l.b16 %v916
        %v991 = vunpack.c.l.b16 %v917
        %v992 = vunpack.c.l.b16 %v918
        %v993 = vunpack.c.l.b16 %v919
        %v994 = vunpack.c.l.b16 %v920
        %v995 = vunpack.c.l.b16 %v921
        %v996 = vunpack.c.l.b16 %v922
        %v997 = vunpack.c.l.b16 %v923
        %v998 = vunpack.c.l.b16 %v924
        %v999 = vpack.c.b16 %v984, %v983
        %v1000 = vpack.c.b16 %v986, %v985
        %v1001 = vpack.c.b16 %v988, %v987
        %v1002 = vpack.c.b16 %v990, %v989
        %v1003 = vpack.c.b16 %v992, %v991
        %v1004 = vpack.c.b16 %v994, %v993
        %v1005 = vpack.c.b16 %v996, %v995
        %v1006 = vpack.c.b16 %v998, %v997
        %vm1007 = vcmask 261120
        %v1009 = vsel %vm1007, %v966, 0
        %v1012 = vsel %vm1007, %v999, 0
        %v1015 = vsel %vm1007, %v1000, 0
        %v1018 = vsel %vm1007, %v1001, 0
        %v1021 = vsel %vm1007, %v1002, 0
        %v1024 = vsel %vm1007, %v1003, 0
        %v1027 = vsel %vm1007, %v1004, 0
        %v1030 = vsel %vm1007, %v1005, 0
        %v1033 = vsel %vm1007, %v1006, 0
        %1035 = vmatpush.bf16.xpose.msra.mxu0 %v1033
        %1036 = vmatpush.bf16.xpose.msra.mxu0 %v1030
        %1037 = vmatpush.bf16.xpose.msra.mxu0 %v1027
        %1038 = vmatpush.bf16.xpose.msra.mxu0 %v1024
        %1039 = vmatpush.bf16.xpose.msra.mxu0 %v1021
        %1040 = vmatpush.bf16.xpose.msra.mxu0 %v1018
        %1041 = vmatpush.bf16.xpose.msra.mxu0 %v1015
        %1042 = vmatpush.bf16.xpose.msra.mxu0 %v1012
        %1043 = vmatmul.bf16.gmra.mxu0 %v1009
        %v1044 = vpop.f32.mrf.mxu0
        %v1045 = vadd.f32 %v961, %v1044
        %v1046 = vpop.f32.mrf.mxu0
        %v1047 = vadd.f32 %v961, %v1046
        %1048 = vdwg.mxu0
        %1049 = vmax.xlane.f32.xlu0 %v1045
        %v1050 = vpop.xlane.xlu0 %1049
        %1051 = vmax.xlane.f32.xlu0 %v1047
        %v1052 = vpop.xlane.xlu0 %1051
        %v1053 = vsub.f32 %v1045, %v1050
        %v1054 = vsub.f32 %v1047, %v1052
        %v1055 = vmul.f32 %v1053, 1.442695
        %v1056 = vpow.pop %v1055
        %v1057 = vmul.f32 %v1054, 1.442695
        %v1058 = vpow.pop %v1057
        %1059 = vadd.xlane.f32.xlu0 %v1056
        %v1060 = vpop.xlane.xlu0 %1059
        %1061 = vadd.xlane.f32.xlu0 %v1058
        %v1062 = vpop.xlane.xlu0 %1061
        %v1063 = vrcp.pop %v1060
        %v1064 = vrcp.pop %v1062
        %v1065 = vmul.f32 %v1056, %v1063
        %v1066 = vmul.f32 %v1058, %v1064
        %v1067 = vpack.c.bf16 %v1065, %v1065
        %v1068 = vpack.c.bf16 %v1066, %v1066
        %v1071 = vunpack.c.l.b16 %v1067
        %v1072 = vunpack.c.l.b16 %v1068
        %v1073 = vpack.c.b16 %v1072, %v1071
        %v1091 = vunpack.c.l.b16 %v942
        %v1092 = vunpack.c.l.b16 %v943
        %v1093 = vunpack.c.l.b16 %v944
        %v1094 = vunpack.c.l.b16 %v945
        %v1095 = vunpack.c.l.b16 %v946
        %v1096 = vunpack.c.l.b16 %v947
        %v1097 = vunpack.c.l.b16 %v948
        %v1098 = vunpack.c.l.b16 %v949
        %v1099 = vunpack.c.l.b16 %v950
        %v1100 = vunpack.c.l.b16 %v951
        %v1101 = vunpack.c.l.b16 %v952
        %v1102 = vunpack.c.l.b16 %v953
        %v1103 = vunpack.c.l.b16 %v954
        %v1104 = vunpack.c.l.b16 %v955
        %v1105 = vunpack.c.l.b16 %v956
        %v1106 = vunpack.c.l.b16 %v957
        %v1107 = vpack.c.b16 %v1092, %v1091
        %v1108 = vpack.c.b16 %v1094, %v1093
        %v1109 = vpack.c.b16 %v1096, %v1095
        %v1110 = vpack.c.b16 %v1098, %v1097
        %v1111 = vpack.c.b16 %v1100, %v1099
        %v1112 = vpack.c.b16 %v1102, %v1101
        %v1113 = vpack.c.b16 %v1104, %v1103
        %v1114 = vpack.c.b16 %v1106, %v1105
        %1123 = vmatpush.bf16.msra.mxu0 %v1114
        %1124 = vmatpush.bf16.msra.mxu0 %v1113
        %1125 = vmatpush.bf16.msra.mxu0 %v1112
        %1126 = vmatpush.bf16.msra.mxu0 %v1111
        %1127 = vmatpush.bf16.msra.mxu0 %v1110
        %1128 = vmatpush.bf16.msra.mxu0 %v1109
        %1129 = vmatpush.bf16.msra.mxu0 %v1108
        %1130 = vmatpush.bf16.msra.mxu0 %v1107
        %1131 = vmatmul.bf16.gmra.mxu0 %v1073
        %v1132 = vpop.f32.mrf.mxu0
        %v1133 = vadd.f32 0.0, %v1132
        %v1134 = vpop.f32.mrf.mxu0
        %v1135 = vadd.f32 0.0, %v1134
        %1136 = vdwg.mxu0
        %v1137 = vpack.c.bf16 %v1135, %v1133
        %v1138 = vld [vmem:[#allocation11] sm:$0xf]
        %v1139 = vld [vmem:[#allocation11 + $0x4] sm:$0xf]
        %v1140 = vld [vmem:[#allocation11 + $0x8] sm:$0xf]
        %v1141 = vld [vmem:[#allocation11 + $0xc] sm:$0xf]
        %1142 = vrot.lane.b32.xlu0 %v966, 96
        %v1143 = vpop.permute.xlu0 %1142
        %1144 = vrot.lane.b32.xlu0 %v999, 96
        %v1145 = vpop.permute.xlu0 %1144
        %1146 = vrot.lane.b32.xlu0 %v1000, 96
        %v1147 = vpop.permute.xlu0 %1146
        %1148 = vrot.lane.b32.xlu0 %v1001, 96
        %v1149 = vpop.permute.xlu0 %1148
        %1150 = vrot.lane.b32.xlu0 %v1002, 96
        %v1151 = vpop.permute.xlu0 %1150
        %1152 = vrot.lane.b32.xlu0 %v1003, 96
        %v1153 = vpop.permute.xlu0 %1152
        %1154 = vrot.lane.b32.xlu0 %v1004, 96
        %v1155 = vpop.permute.xlu0 %1154
        %1156 = vrot.lane.b32.xlu0 %v1005, 96
        %v1157 = vpop.permute.xlu0 %1156
        %1158 = vrot.lane.b32.xlu0 %v1006, 96
        %v1159 = vpop.permute.xlu0 %1158
        %v1161 = vsel %vm1007, %v1143, 0
        %v1164 = vsel %vm1007, %v1145, 0
        %v1167 = vsel %vm1007, %v1147, 0
        %v1170 = vsel %vm1007, %v1149, 0
        %v1173 = vsel %vm1007, %v1151, 0
        %v1176 = vsel %vm1007, %v1153, 0
        %v1179 = vsel %vm1007, %v1155, 0
        %v1182 = vsel %vm1007, %v1157, 0
        %v1185 = vsel %vm1007, %v1159, 0
        %1187 = vmatpush.bf16.xpose.msra.mxu0 %v1185
        %1188 = vmatpush.bf16.xpose.msra.mxu0 %v1182
        %1189 = vmatpush.bf16.xpose.msra.mxu0 %v1179
        %1190 = vmatpush.bf16.xpose.msra.mxu0 %v1176
        %1191 = vmatpush.bf16.xpose.msra.mxu0 %v1173
        %1192 = vmatpush.bf16.xpose.msra.mxu0 %v1170
        %1193 = vmatpush.bf16.xpose.msra.mxu0 %v1167
        %1194 = vmatpush.bf16.xpose.msra.mxu0 %v1164
        %1195 = vmatmul.bf16.gmra.mxu0 %v1161
        %v1196 = vpop.f32.mrf.mxu0
        %v1197 = vadd.f32 %v961, %v1196
        %v1198 = vpop.f32.mrf.mxu0
        %v1199 = vadd.f32 %v961, %v1198
        %1200 = vdwg.mxu0
        %1201 = vmax.xlane.f32.xlu0 %v1197
        %v1202 = vpop.xlane.xlu0 %1201
        %1203 = vmax.xlane.f32.xlu0 %v1199
        %v1204 = vpop.xlane.xlu0 %1203
        %v1205 = vsub.f32 %v1197, %v1202
        %v1206 = vsub.f32 %v1199, %v1204
        %v1207 = vmul.f32 %v1205, 1.442695
        %v1208 = vpow.pop %v1207
        %v1209 = vmul.f32 %v1206, 1.442695
        %v1210 = vpow.pop %v1209
        %1211 = vadd.xlane.f32.xlu0 %v1208
        %v1212 = vpop.xlane.xlu0 %1211
        %1213 = vadd.xlane.f32.xlu0 %v1210
        %v1214 = vpop.xlane.xlu0 %1213
        %v1215 = vrcp.pop %v1212
        %v1216 = vrcp.pop %v1214
        %v1217 = vmul.f32 %v1208, %v1215
        %v1218 = vmul.f32 %v1210, %v1216
        %v1219 = vpack.c.bf16 %v1217, %v1217
        %v1220 = vpack.c.bf16 %v1218, %v1218
        %v1223 = vunpack.c.l.b16 %v1219
        %v1224 = vunpack.c.l.b16 %v1220
        %v1225 = vpack.c.b16 %v1224, %v1223
        %1227 = vrot.lane.b32.xlu0 %v1107, 96
        %v1228 = vpop.permute.xlu0 %1227
        %1229 = vrot.lane.b32.xlu0 %v1108, 96
        %v1230 = vpop.permute.xlu0 %1229
        %1231 = vrot.lane.b32.xlu0 %v1109, 96
        %v1232 = vpop.permute.xlu0 %1231
        %1233 = vrot.lane.b32.xlu0 %v1110, 96
        %v1234 = vpop.permute.xlu0 %1233
        %1235 = vrot.lane.b32.xlu0 %v1111, 96
        %v1236 = vpop.permute.xlu0 %1235
        %1237 = vrot.lane.b32.xlu0 %v1112, 96
        %v1238 = vpop.permute.xlu0 %1237
        %1239 = vrot.lane.b32.xlu0 %v1113, 96
        %v1240 = vpop.permute.xlu0 %1239
        %1241 = vrot.lane.b32.xlu0 %v1114, 96
        %v1242 = vpop.permute.xlu0 %1241
        %1251 = vmatpush.bf16.msra.mxu0 %v1242
        %1252 = vmatpush.bf16.msra.mxu0 %v1240
        %1253 = vmatpush.bf16.msra.mxu0 %v1238
        %1254 = vmatpush.bf16.msra.mxu0 %v1236
        %1255 = vmatpush.bf16.msra.mxu0 %v1234
        %1256 = vmatpush.bf16.msra.mxu0 %v1232
        %1257 = vmatpush.bf16.msra.mxu0 %v1230
        %1258 = vmatpush.bf16.msra.mxu0 %v1228
        %1259 = vmatmul.bf16.gmra.mxu0 %v1225
        %v1260 = vpop.f32.mrf.mxu0
        %v1261 = vadd.f32 0.0, %v1260
        %v1262 = vpop.f32.mrf.mxu0
        %v1263 = vadd.f32 0.0, %v1262
        %1264 = vdwg.mxu0
        %v1265 = vpack.c.bf16 %v1263, %v1261
        %s1266 = scalar_lea.vmem [#allocation11], 16
        %v1267 = vld [vmem:[%s1266] sm:$0xf]
        %v1268 = vld [vmem:[%s1266 + $0x4] sm:$0xf]
        %v1269 = vld [vmem:[%s1266 + $0x8] sm:$0xf]
        %v1270 = vld [vmem:[%s1266 + $0xc] sm:$0xf]
        %v1275 = vunpack.c.l.b16 %v1267
        %v1276 = vunpack.c.l.b16 %v1268
        %v1277 = vunpack.c.l.b16 %v1269
        %v1278 = vunpack.c.l.b16 %v1270
        %v1279 = vpack.c.b16 %v1276, %v1275
        %v1280 = vpack.c.b16 %v1278, %v1277
        %v1284 = vsel %vm1007, %v1265, 0
        %1286 = vmatpush.bf16.msra.mxu0 0
        %1287 = vmatpush.bf16.msra.mxu0 0
        %1288 = vmatpush.bf16.msra.mxu0 0
        %1289 = vmatpush.bf16.msra.mxu0 0
        %1290 = vmatpush.bf16.msra.mxu0 0
        %1291 = vmatpush.bf16.msra.mxu0 0
        %1292 = vmatpush.bf16.msra.mxu0 %v1280
        %1293 = vmatpush.bf16.msra.mxu0 %v1279
        %1294 = vmatmul.bf16.gmra.mxu0 %v1284
        %v1295 = vpop.f32.mrf.mxu0
        %v1296 = vadd.f32 0.0, %v1295
        %v1297 = vpop.f32.mrf.mxu0
        %v1298 = vadd.f32 0.0, %v1297
        %1299 = vdwg.mxu0
        %v1304 = vunpack.c.l.b16 %v1138
        %v1305 = vunpack.c.l.b16 %v1139
        %v1306 = vunpack.c.l.b16 %v1140
        %v1307 = vunpack.c.l.b16 %v1141
        %v1308 = vpack.c.b16 %v1305, %v1304
        %v1309 = vpack.c.b16 %v1307, %v1306
        %v1313 = vsel %vm1007, %v1137, 0
        %1315 = vmatpush.bf16.msra.mxu0 0
        %1316 = vmatpush.bf16.msra.mxu0 0
        %1317 = vmatpush.bf16.msra.mxu0 0
        %1318 = vmatpush.bf16.msra.mxu0 0
        %1319 = vmatpush.bf16.msra.mxu0 0
        %1320 = vmatpush.bf16.msra.mxu0 0
        %1321 = vmatpush.bf16.msra.mxu0 %v1309
        %1322 = vmatpush.bf16.msra.mxu0 %v1308
        %1323 = vmatmul.bf16.gmra.mxu0 %v1313
        %v1324 = vpop.f32.mrf.mxu0
        %v1325 = vadd.f32 %v1296, %v1324
        %v1326 = vpop.f32.mrf.mxu0
        %v1327 = vadd.f32 %v1298, %v1326
        %1328 = vdwg.mxu0
        %1329 = vrot.lane.b32.xlu0 %v966, 64
        %v1330 = vpop.permute.xlu0 %1329
        %1331 = vrot.lane.b32.xlu0 %v999, 64
        %v1332 = vpop.permute.xlu0 %1331
        %1333 = vrot.lane.b32.xlu0 %v1000, 64
        %v1334 = vpop.permute.xlu0 %1333
        %1335 = vrot.lane.b32.xlu0 %v1001, 64
        %v1336 = vpop.permute.xlu0 %1335
        %1337 = vrot.lane.b32.xlu0 %v1002, 64
        %v1338 = vpop.permute.xlu0 %1337
        %1339 = vrot.lane.b32.xlu0 %v1003, 64
        %v1340 = vpop.permute.xlu0 %1339
        %1341 = vrot.lane.b32.xlu0 %v1004, 64
        %v1342 = vpop.permute.xlu0 %1341
        %1343 = vrot.lane.b32.xlu0 %v1005, 64
        %v1344 = vpop.permute.xlu0 %1343
        %1345 = vrot.lane.b32.xlu0 %v1006, 64
        %v1346 = vpop.permute.xlu0 %1345
        %v1348 = vsel %vm1007, %v1330, 0
        %v1351 = vsel %vm1007, %v1332, 0
        %v1354 = vsel %vm1007, %v1334, 0
        %v1357 = vsel %vm1007, %v1336, 0
        %v1360 = vsel %vm1007, %v1338, 0
        %v1363 = vsel %vm1007, %v1340, 0
        %v1366 = vsel %vm1007, %v1342, 0
        %v1369 = vsel %vm1007, %v1344, 0
        %v1372 = vsel %vm1007, %v1346, 0
        %1374 = vmatpush.bf16.xpose.msra.mxu0 %v1372
        %1375 = vmatpush.bf16.xpose.msra.mxu0 %v1369
        %1376 = vmatpush.bf16.xpose.msra.mxu0 %v1366
        %1377 = vmatpush.bf16.xpose.msra.mxu0 %v1363
        %1378 = vmatpush.bf16.xpose.msra.mxu0 %v1360
        %1379 = vmatpush.bf16.xpose.msra.mxu0 %v1357
        %1380 = vmatpush.bf16.xpose.msra.mxu0 %v1354
        %1381 = vmatpush.bf16.xpose.msra.mxu0 %v1351
        %1382 = vmatmul.bf16.gmra.mxu0 %v1348
        %v1383 = vpop.f32.mrf.mxu0
        %v1384 = vadd.f32 %v961, %v1383
        %v1385 = vpop.f32.mrf.mxu0
        %v1386 = vadd.f32 %v961, %v1385
        %1387 = vdwg.mxu0
        %1388 = vmax.xlane.f32.xlu0 %v1384
        %v1389 = vpop.xlane.xlu0 %1388
        %1390 = vmax.xlane.f32.xlu0 %v1386
        %v1391 = vpop.xlane.xlu0 %1390
        %v1392 = vsub.f32 %v1384, %v1389
        %v1393 = vsub.f32 %v1386, %v1391
        %v1394 = vmul.f32 %v1392, 1.442695
        %v1395 = vpow.pop %v1394
        %v1396 = vmul.f32 %v1393, 1.442695
        %v1397 = vpow.pop %v1396
        %1398 = vadd.xlane.f32.xlu0 %v1395
        %v1399 = vpop.xlane.xlu0 %1398
        %1400 = vadd.xlane.f32.xlu0 %v1397
        %v1401 = vpop.xlane.xlu0 %1400
        %v1402 = vrcp.pop %v1399
        %v1403 = vrcp.pop %v1401
        %v1404 = vmul.f32 %v1395, %v1402
        %v1405 = vmul.f32 %v1397, %v1403
        %v1406 = vpack.c.bf16 %v1404, %v1404
        %v1407 = vpack.c.bf16 %v1405, %v1405
        %v1410 = vunpack.c.l.b16 %v1406
        %v1411 = vunpack.c.l.b16 %v1407
        %v1412 = vpack.c.b16 %v1411, %v1410
        %1414 = vrot.lane.b32.xlu0 %v1107, 64
        %v1415 = vpop.permute.xlu0 %1414
        %1416 = vrot.lane.b32.xlu0 %v1108, 64
        %v1417 = vpop.permute.xlu0 %1416
        %1418 = vrot.lane.b32.xlu0 %v1109, 64
        %v1419 = vpop.permute.xlu0 %1418
        %1420 = vrot.lane.b32.xlu0 %v1110, 64
        %v1421 = vpop.permute.xlu0 %1420
        %1422 = vrot.lane.b32.xlu0 %v1111, 64
        %v1423 = vpop.permute.xlu0 %1422
        %1424 = vrot.lane.b32.xlu0 %v1112, 64
        %v1425 = vpop.permute.xlu0 %1424
        %1426 = vrot.lane.b32.xlu0 %v1113, 64
        %v1427 = vpop.permute.xlu0 %1426
        %1428 = vrot.lane.b32.xlu0 %v1114, 64
        %v1429 = vpop.permute.xlu0 %1428
        %1438 = vmatpush.bf16.msra.mxu0 %v1429
        %1439 = vmatpush.bf16.msra.mxu0 %v1427
        %1440 = vmatpush.bf16.msra.mxu0 %v1425
        %1441 = vmatpush.bf16.msra.mxu0 %v1423
        %1442 = vmatpush.bf16.msra.mxu0 %v1421
        %1443 = vmatpush.bf16.msra.mxu0 %v1419
        %1444 = vmatpush.bf16.msra.mxu0 %v1417
        %1445 = vmatpush.bf16.msra.mxu0 %v1415
        %1446 = vmatmul.bf16.gmra.mxu0 %v1412
        %v1447 = vpop.f32.mrf.mxu0
        %v1448 = vadd.f32 0.0, %v1447
        %v1449 = vpop.f32.mrf.mxu0
        %v1450 = vadd.f32 0.0, %v1449
        %1451 = vdwg.mxu0
        %v1452 = vpack.c.bf16 %v1450, %v1448
        %s1453 = scalar_lea.vmem [#allocation11], 32
        %v1454 = vld [vmem:[%s1453] sm:$0xf]
        %v1455 = vld [vmem:[%s1453 + $0x4] sm:$0xf]
        %v1456 = vld [vmem:[%s1453 + $0x8] sm:$0xf]
        %v1457 = vld [vmem:[%s1453 + $0xc] sm:$0xf]
        %v1462 = vunpack.c.l.b16 %v1454
        %v1463 = vunpack.c.l.b16 %v1455
        %v1464 = vunpack.c.l.b16 %v1456
        %v1465 = vunpack.c.l.b16 %v1457
        %v1466 = vpack.c.b16 %v1463, %v1462
        %v1467 = vpack.c.b16 %v1465, %v1464
        %v1471 = vsel %vm1007, %v1452, 0
        %1473 = vmatpush.bf16.msra.mxu0 0
        %1474 = vmatpush.bf16.msra.mxu0 0
        %1475 = vmatpush.bf16.msra.mxu0 0
        %1476 = vmatpush.bf16.msra.mxu0 0
        %1477 = vmatpush.bf16.msra.mxu0 0
        %1478 = vmatpush.bf16.msra.mxu0 0
        %1479 = vmatpush.bf16.msra.mxu0 %v1467
        %1480 = vmatpush.bf16.msra.mxu0 %v1466
        %1481 = vmatmul.bf16.gmra.mxu0 %v1471
        %v1482 = vpop.f32.mrf.mxu0
        %v1483 = vadd.f32 0.0, %v1482
        %v1484 = vpop.f32.mrf.mxu0
        %v1485 = vadd.f32 0.0, %v1484
        %1486 = vdwg.mxu0
        %v1487 = vadd.f32 %v1325, %v1483
        %v1488 = vadd.f32 %v1327, %v1485
        %1489 = vrot.lane.b32.xlu0 %v966, 32
        %v1490 = vpop.permute.xlu0 %1489
        %1491 = vrot.lane.b32.xlu0 %v999, 32
        %v1492 = vpop.permute.xlu0 %1491
        %1493 = vrot.lane.b32.xlu0 %v1000, 32
        %v1494 = vpop.permute.xlu0 %1493
        %1495 = vrot.lane.b32.xlu0 %v1001, 32
        %v1496 = vpop.permute.xlu0 %1495
        %1497 = vrot.lane.b32.xlu0 %v1002, 32
        %v1498 = vpop.permute.xlu0 %1497
        %1499 = vrot.lane.b32.xlu0 %v1003, 32
        %v1500 = vpop.permute.xlu0 %1499
        %1501 = vrot.lane.b32.xlu0 %v1004, 32
        %v1502 = vpop.permute.xlu0 %1501
        %1503 = vrot.lane.b32.xlu0 %v1005, 32
        %v1504 = vpop.permute.xlu0 %1503
        %1505 = vrot.lane.b32.xlu0 %v1006, 32
        %v1506 = vpop.permute.xlu0 %1505
        %v1508 = vsel %vm1007, %v1490, 0
        %v1511 = vsel %vm1007, %v1492, 0
        %v1514 = vsel %vm1007, %v1494, 0
        %v1517 = vsel %vm1007, %v1496, 0
        %v1520 = vsel %vm1007, %v1498, 0
        %v1523 = vsel %vm1007, %v1500, 0
        %v1526 = vsel %vm1007, %v1502, 0
        %v1529 = vsel %vm1007, %v1504, 0
        %v1532 = vsel %vm1007, %v1506, 0
        %1534 = vmatpush.bf16.xpose.msra.mxu0 %v1532
        %1535 = vmatpush.bf16.xpose.msra.mxu0 %v1529
        %1536 = vmatpush.bf16.xpose.msra.mxu0 %v1526
        %1537 = vmatpush.bf16.xpose.msra.mxu0 %v1523
        %1538 = vmatpush.bf16.xpose.msra.mxu0 %v1520
        %1539 = vmatpush.bf16.xpose.msra.mxu0 %v1517
        %1540 = vmatpush.bf16.xpose.msra.mxu0 %v1514
        %1541 = vmatpush.bf16.xpose.msra.mxu0 %v1511
        %1542 = vmatmul.bf16.gmra.mxu0 %v1508
        %v1543 = vpop.f32.mrf.mxu0
        %v1544 = vadd.f32 %v961, %v1543
        %v1545 = vpop.f32.mrf.mxu0
        %v1546 = vadd.f32 %v961, %v1545
        %1547 = vdwg.mxu0
        %1548 = vmax.xlane.f32.xlu0 %v1544
        %v1549 = vpop.xlane.xlu0 %1548
        %1550 = vmax.xlane.f32.xlu0 %v1546
        %v1551 = vpop.xlane.xlu0 %1550
        %v1552 = vsub.f32 %v1544, %v1549
        %v1553 = vsub.f32 %v1546, %v1551
        %v1554 = vmul.f32 %v1552, 1.442695
        %v1555 = vpow.pop %v1554
        %v1556 = vmul.f32 %v1553, 1.442695
        %v1557 = vpow.pop %v1556
        %1558 = vadd.xlane.f32.xlu0 %v1555
        %v1559 = vpop.xlane.xlu0 %1558
        %1560 = vadd.xlane.f32.xlu0 %v1557
        %v1561 = vpop.xlane.xlu0 %1560
        %v1562 = vrcp.pop %v1559
        %v1563 = vrcp.pop %v1561
        %v1564 = vmul.f32 %v1555, %v1562
        %v1565 = vmul.f32 %v1557, %v1563
        %v1566 = vpack.c.bf16 %v1564, %v1564
        %v1567 = vpack.c.bf16 %v1565, %v1565
        %v1570 = vunpack.c.l.b16 %v1566
        %v1571 = vunpack.c.l.b16 %v1567
        %v1572 = vpack.c.b16 %v1571, %v1570
        %1574 = vrot.lane.b32.xlu0 %v1107, 32
        %v1575 = vpop.permute.xlu0 %1574
        %1576 = vrot.lane.b32.xlu0 %v1108, 32
        %v1577 = vpop.permute.xlu0 %1576
        %1578 = vrot.lane.b32.xlu0 %v1109, 32
        %v1579 = vpop.permute.xlu0 %1578
        %1580 = vrot.lane.b32.xlu0 %v1110, 32
        %v1581 = vpop.permute.xlu0 %1580
        %1582 = vrot.lane.b32.xlu0 %v1111, 32
        %v1583 = vpop.permute.xlu0 %1582
        %1584 = vrot.lane.b32.xlu0 %v1112, 32
        %v1585 = vpop.permute.xlu0 %1584
        %1586 = vrot.lane.b32.xlu0 %v1113, 32
        %v1587 = vpop.permute.xlu0 %1586
        %1588 = vrot.lane.b32.xlu0 %v1114, 32
        %v1589 = vpop.permute.xlu0 %1588
        %1598 = vmatpush.bf16.msra.mxu0 %v1589
        %1599 = vmatpush.bf16.msra.mxu0 %v1587
        %1600 = vmatpush.bf16.msra.mxu0 %v1585
        %1601 = vmatpush.bf16.msra.mxu0 %v1583
        %1602 = vmatpush.bf16.msra.mxu0 %v1581
        %1603 = vmatpush.bf16.msra.mxu0 %v1579
        %1604 = vmatpush.bf16.msra.mxu0 %v1577
        %1605 = vmatpush.bf16.msra.mxu0 %v1575
        %1606 = vmatmul.bf16.gmra.mxu0 %v1572
        %v1607 = vpop.f32.mrf.mxu0
        %v1608 = vadd.f32 0.0, %v1607
        %v1609 = vpop.f32.mrf.mxu0
        %v1610 = vadd.f32 0.0, %v1609
        %1611 = vdwg.mxu0
        %v1612 = vpack.c.bf16 %v1610, %v1608
        %s1613 = scalar_lea.vmem [#allocation11], 48
        %v1614 = vld [vmem:[%s1613] sm:$0xf]
        %v1615 = vld [vmem:[%s1613 + $0x4] sm:$0xf]
        %v1616 = vld [vmem:[%s1613 + $0x8] sm:$0xf]
        %v1617 = vld [vmem:[%s1613 + $0xc] sm:$0xf]
        %v1622 = vunpack.c.l.b16 %v1614
        %v1623 = vunpack.c.l.b16 %v1615
        %v1624 = vunpack.c.l.b16 %v1616
        %v1625 = vunpack.c.l.b16 %v1617
        %v1626 = vpack.c.b16 %v1623, %v1622
        %v1627 = vpack.c.b16 %v1625, %v1624
        %v1631 = vsel %vm1007, %v1612, 0
        %1633 = vmatpush.bf16.msra.mxu0 0
        %1634 = vmatpush.bf16.msra.mxu0 0
        %1635 = vmatpush.bf16.msra.mxu0 0
        %1636 = vmatpush.bf16.msra.mxu0 0
        %1637 = vmatpush.bf16.msra.mxu0 0
        %1638 = vmatpush.bf16.msra.mxu0 0
        %1639 = vmatpush.bf16.msra.mxu0 %v1627
        %1640 = vmatpush.bf16.msra.mxu0 %v1626
        %1641 = vmatmul.bf16.gmra.mxu0 %v1631
        %v1642 = vpop.f32.mrf.mxu0
        %v1643 = vadd.f32 0.0, %v1642
        %v1644 = vpop.f32.mrf.mxu0
        %v1645 = vadd.f32 0.0, %v1644
        %1646 = vdwg.mxu0
        %v1647 = vadd.f32 %v1487, %v1643
        %v1648 = vadd.f32 %v1488, %v1645
        %v1649 = vadd.f32 %v497, %v1647
        %v1650 = vadd.f32 %v498, %v1648
        %v1651 = vperm.slane %v495, 5
        %v1652 = vadd.f32 %v1649, %v1651
        %v1653 = vadd.f32 %v1650, %v1651
        %1654 = vadd.xlane.f32.xlu0 %v1652
        %v1655 = vpop.xlane.xlu0 %1654
        %1656 = vadd.xlane.f32.xlu0 %v1653
        %v1657 = vpop.xlane.xlu0 %1656
        %v1658 = vmul.f32 %v1655, %v525
        %v1659 = vmul.f32 %v1657, %v525
        %v1660 = vsub.f32 %v1652, %v1658
        %v1661 = vsub.f32 %v1653, %v1659
        %v1662 = vmul.f32 %v1660, %v1660
        %v1663 = vmul.f32 %v1661, %v1661
        %1664 = vadd.xlane.f32.xlu0 %v1662
        %v1665 = vpop.xlane.xlu0 %1664
        %1666 = vadd.xlane.f32.xlu0 %v1663
        %v1667 = vpop.xlane.xlu0 %1666
        %v1668 = vmul.f32 %v1665, %v525
        %v1669 = vmul.f32 %v1667, %v525
        %v1670 = vadd.f32 %v1668, 1e-05
        %v1671 = vadd.f32 %v1669, 1e-05
        %v1672 = vrsqrt.pop %v1670
        %v1673 = vmul.f32 %v1672, %v1670
        %v1674 = vmul.f32 %v1673, %v1672
        %v1675 = vmul.f32 0.5, %v1674
        %v1676 = vsub.f32 1.5, %v1675
        %v1677 = vmul.f32 %v1672, %v1676
        %vm1678 = vweird.f32 %v1670
        %vm1679 = vweird.f32 %v1672
        %vm1680 = vmor %vm1678, %vm1679
        %v1681 = vsel %vm1680, %v1672, %v1677
        %v1682 = vrsqrt.pop %v1671
        %v1683 = vmul.f32 %v1682, %v1671
        %v1684 = vmul.f32 %v1683, %v1682
        %v1685 = vmul.f32 0.5, %v1684
        %v1686 = vsub.f32 1.5, %v1685
        %v1687 = vmul.f32 %v1682, %v1686
        %vm1688 = vweird.f32 %v1671
        %vm1689 = vweird.f32 %v1682
        %vm1690 = vmor %vm1688, %vm1689
        %v1691 = vsel %vm1690, %v1682, %v1687
        %v1692 = vmul.f32 %v1660, %v1681
        %v1693 = vmul.f32 %v1661, %v1691
        %v1694 = vperm.slane %v495, 6
        %v1695 = vmul.f32 %v1692, %v1694
        %v1696 = vmul.f32 %v1693, %v1694
        %v1697 = vperm.slane %v495, 7
        %v1698 = vadd.f32 %v1695, %v1697
        %v1699 = vadd.f32 %v1696, %v1697
        %v1700 = vpack.c.bf16 %v1699, %v1698
        %v1701 = vld [vmem:[#allocation13] sm:$0xff]
        %v1702 = vld [vmem:[#allocation13 + $0x8] sm:$0xff]
        %v1703 = vld [vmem:[#allocation13 + $0x10] sm:$0xff]
        %v1704 = vld [vmem:[#allocation13 + $0x18] sm:$0xff]
        %v1705 = vld [vmem:[#allocation13 + $0x20] sm:$0xff]
        %v1706 = vld [vmem:[#allocation13 + $0x28] sm:$0xff]
        %v1707 = vld [vmem:[#allocation13 + $0x30] sm:$0xff]
        %v1708 = vld [vmem:[#allocation13 + $0x38] sm:$0xff]
        %v1709 = vld [vmem:[#allocation13 + $0x40] sm:$0xff]
        %v1710 = vld [vmem:[#allocation13 + $0x48] sm:$0xff]
        %v1711 = vld [vmem:[#allocation13 + $0x50] sm:$0xff]
        %v1712 = vld [vmem:[#allocation13 + $0x58] sm:$0xff]
        %v1713 = vld [vmem:[#allocation13 + $0x60] sm:$0xff]
        %v1714 = vld [vmem:[#allocation13 + $0x68] sm:$0xff]
        %v1715 = vld [vmem:[#allocation13 + $0x70] sm:$0xff]
        %v1716 = vld [vmem:[#allocation13 + $0x78] sm:$0xff]
        %v1717 = vld [vmem:[%s3] sm:$0x3]
        %v1719 = vperm.slane %v1717, 0
        %v1720 = vperm.slane %v1717, 1
        %v1739 = vunpack.c.l.b16 %v1701
        %v1740 = vunpack.c.h.b16 %v1701
        %v1741 = vunpack.c.l.b16 %v1702
        %v1742 = vunpack.c.h.b16 %v1702
        %v1743 = vunpack.c.l.b16 %v1703
        %v1744 = vunpack.c.h.b16 %v1703
        %v1745 = vunpack.c.l.b16 %v1704
        %v1746 = vunpack.c.h.b16 %v1704
        %v1747 = vunpack.c.l.b16 %v1705
        %v1748 = vunpack.c.h.b16 %v1705
        %v1749 = vunpack.c.l.b16 %v1706
        %v1750 = vunpack.c.h.b16 %v1706
        %v1751 = vunpack.c.l.b16 %v1707
        %v1752 = vunpack.c.h.b16 %v1707
        %v1753 = vunpack.c.l.b16 %v1708
        %v1754 = vunpack.c.h.b16 %v1708
        %v1755 = vunpack.c.l.b16 %v1709
        %v1756 = vunpack.c.h.b16 %v1709
        %v1757 = vunpack.c.l.b16 %v1710
        %v1758 = vunpack.c.h.b16 %v1710
        %v1759 = vunpack.c.l.b16 %v1711
        %v1760 = vunpack.c.h.b16 %v1711
        %v1761 = vunpack.c.l.b16 %v1712
        %v1762 = vunpack.c.h.b16 %v1712
        %v1763 = vunpack.c.l.b16 %v1713
        %v1764 = vunpack.c.h.b16 %v1713
        %v1765 = vunpack.c.l.b16 %v1714
        %v1766 = vunpack.c.h.b16 %v1714
        %v1767 = vunpack.c.l.b16 %v1715
        %v1768 = vunpack.c.h.b16 %v1715
        %v1769 = vunpack.c.l.b16 %v1716
        %v1770 = vunpack.c.h.b16 %v1716
        %v1771 = vpack.c.b16 %v1741, %v1739
        %v1772 = vpack.c.b16 %v1742, %v1740
        %v1773 = vpack.c.b16 %v1745, %v1743
        %v1774 = vpack.c.b16 %v1746, %v1744
        %v1775 = vpack.c.b16 %v1749, %v1747
        %v1776 = vpack.c.b16 %v1750, %v1748
        %v1777 = vpack.c.b16 %v1753, %v1751
        %v1778 = vpack.c.b16 %v1754, %v1752
        %v1779 = vpack.c.b16 %v1757, %v1755
        %v1780 = vpack.c.b16 %v1758, %v1756
        %v1781 = vpack.c.b16 %v1761, %v1759
        %v1782 = vpack.c.b16 %v1762, %v1760
        %v1783 = vpack.c.b16 %v1765, %v1763
        %v1784 = vpack.c.b16 %v1766, %v1764
        %v1785 = vpack.c.b16 %v1769, %v1767
        %v1786 = vpack.c.b16 %v1770, %v1768
        %1803 = vmatpush.bf16.msra.mxu0 %v1785
        %1804 = vmatpush.bf16.msra.mxu0 %v1783
        %1805 = vmatpush.bf16.msra.mxu0 %v1781
        %1806 = vmatpush.bf16.msra.mxu0 %v1779
        %1807 = vmatpush.bf16.msra.mxu0 %v1777
        %1808 = vmatpush.bf16.msra.mxu0 %v1775
        %1809 = vmatpush.bf16.msra.mxu0 %v1773
        %1810 = vmatpush.bf16.msra.mxu0 %v1771
        %1811 = vmatmul.bf16.gmra.mxu0 %v1700
        %v1812 = vpop.f32.mrf.mxu0
        %v1813 = vadd.f32 %v1719, %v1812
        %v1814 = vpop.f32.mrf.mxu0
        %v1815 = vadd.f32 %v1719, %v1814
        %1816 = vdwg.mxu0
        %1817 = vmatpush.bf16.msra.mxu0 %v1786
        %1818 = vmatpush.bf16.msra.mxu0 %v1784
        %1819 = vmatpush.bf16.msra.mxu0 %v1782
        %1820 = vmatpush.bf16.msra.mxu0 %v1780
        %1821 = vmatpush.bf16.msra.mxu0 %v1778
        %1822 = vmatpush.bf16.msra.mxu0 %v1776
        %1823 = vmatpush.bf16.msra.mxu0 %v1774
        %1824 = vmatpush.bf16.msra.mxu0 %v1772
        %1825 = vmatmul.bf16.gmra.mxu0 %v1700
        %v1826 = vpop.f32.mrf.mxu0
        %v1827 = vadd.f32 %v1720, %v1826
        %v1828 = vpop.f32.mrf.mxu0
        %v1829 = vadd.f32 %v1720, %v1828
        %1830 = vdwg.mxu0
        %v1831 = vmul.f32 %v1813, 0.5
        %v1832 = vmul.f32 %v1827, 0.5
        %v1833 = vmul.f32 %v1815, 0.5
        %v1834 = vmul.f32 %v1829, 0.5
        %v1835 = vmul.f32 %v1813, 0.70710677
        %v1836 = vmul.f32 %v1827, 0.70710677
        %v1837 = vmul.f32 %v1815, 0.70710677
        %v1838 = vmul.f32 %v1829, 0.70710677
        %v1839 = vmul.f32 %v1835, %v1835
        %v1840 = vmin.f32 16.0, %v1839
        %v1841 = vmul.f32 %v1840, 2.1237322e-06
        %v1842 = vadd.f32 %v1841, 0.00028619796
        %v1843 = vmul.f32 %v1840, %v1842
        %v1844 = vadd.f32 %v1843, 0.0036580483
        %v1845 = vmul.f32 %v1840, %v1844
        %v1846 = vadd.f32 %v1845, 0.05243302
        %v1847 = vmul.f32 %v1840, %v1846
        %v1848 = vadd.f32 %v1847, 0.18741608
        %v1849 = vmul.f32 %v1840, %v1848
        %v1850 = vadd.f32 %v1849, 1.1283791
        %v1851 = vmul.f32 %v1835, %v1850
        %v1852 = vmul.f32 %v1840, 3.8918573e-05
        %v1853 = vadd.f32 %v1852, 0.001143296
        %v1854 = vmul.f32 %v1840, %v1853
        %v1855 = vadd.f32 %v1854, 0.014752088
        %v1856 = vmul.f32 %v1840, %v1855
        %v1857 = vadd.f32 %v1856, 0.112945676
        %v1858 = vmul.f32 %v1840, %v1857
        %v1859 = vadd.f32 %v1858, 0.4994258
        %v1860 = vmul.f32 %v1840, %v1859
        %v1861 = vadd.f32 %v1860, 1.0
        %v1862 = vrcp.pop %v1861
        %v1863 = vmul.f32 %v1861, %v1862
        %v1864 = vsub.f32 1.0, %v1863
        %v1865 = vmul.f32 %v1862, %v1864
        %v1866 = vadd.f32 %v1862, %v1865
        %vm1867 = vweird.f32 %v1861
        %vm1868 = vweird.f32 %v1862
        %vm1869 = vmor %vm1867, %vm1868
        %v1870 = vsel %vm1869, %v1862, %v1866
        %v1871 = vand.u32 2147483647, %v1861
        %vm1872 = vcmp.eq.f32.partialorder %v1871, 8.507059e+37
        %v1873 = vand.u32 %v1861, 2147483648
        %v1874 = vor.u32 1.1754944e-38, %v1873
        %v1875 = vsel %vm1872, %v1874, %v1870
        %v1876 = vmul.f32 %v1851, %v1875
        %v1877 = vmin.f32 %v1876, 1.0
        %v1878 = vmax.f32 %v1877, -1.0
        %v1879 = vmul.f32 %v1836, %v1836
        %v1880 = vmin.f32 16.0, %v1879
        %v1881 = vmul.f32 %v1880, 2.1237322e-06
        %v1882 = vadd.f32 %v1881, 0.00028619796
        %v1883 = vmul.f32 %v1880, %v1882
        %v1884 = vadd.f32 %v1883, 0.0036580483
        %v1885 = vmul.f32 %v1880, %v1884
        %v1886 = vadd.f32 %v1885, 0.05243302
        %v1887 = vmul.f32 %v1880, %v1886
        %v1888 = vadd.f32 %v1887, 0.18741608
        %v1889 = vmul.f32 %v1880, %v1888
        %v1890 = vadd.f32 %v1889, 1.1283791
        %v1891 = vmul.f32 %v1836, %v1890
        %v1892 = vmul.f32 %v1880, 3.8918573e-05
        %v1893 = vadd.f32 %v1892, 0.001143296
        %v1894 = vmul.f32 %v1880, %v1893
        %v1895 = vadd.f32 %v1894, 0.014752088
        %v1896 = vmul.f32 %v1880, %v1895
        %v1897 = vadd.f32 %v1896, 0.112945676
        %v1898 = vmul.f32 %v1880, %v1897
        %v1899 = vadd.f32 %v1898, 0.4994258
        %v1900 = vmul.f32 %v1880, %v1899
        %v1901 = vadd.f32 %v1900, 1.0
        %v1902 = vrcp.pop %v1901
        %v1903 = vmul.f32 %v1901, %v1902
        %v1904 = vsub.f32 1.0, %v1903
        %v1905 = vmul.f32 %v1902, %v1904
        %v1906 = vadd.f32 %v1902, %v1905
        %vm1907 = vweird.f32 %v1901
        %vm1908 = vweird.f32 %v1902
        %vm1909 = vmor %vm1907, %vm1908
        %v1910 = vsel %vm1909, %v1902, %v1906
        %v1911 = vand.u32 2147483647, %v1901
        %vm1912 = vcmp.eq.f32.partialorder %v1911, 8.507059e+37
        %v1913 = vand.u32 %v1901, 2147483648
        %v1914 = vor.u32 1.1754944e-38, %v1913
        %v1915 = vsel %vm1912, %v1914, %v1910
        %v1916 = vmul.f32 %v1891, %v1915
        %v1917 = vmin.f32 %v1916, 1.0
        %v1918 = vmax.f32 %v1917, -1.0
        %v1919 = vmul.f32 %v1837, %v1837
        %v1920 = vmin.f32 16.0, %v1919
        %v1921 = vmul.f32 %v1920, 2.1237322e-06
        %v1922 = vadd.f32 %v1921, 0.00028619796
        %v1923 = vmul.f32 %v1920, %v1922
        %v1924 = vadd.f32 %v1923, 0.0036580483
        %v1925 = vmul.f32 %v1920, %v1924
        %v1926 = vadd.f32 %v1925, 0.05243302
        %v1927 = vmul.f32 %v1920, %v1926
        %v1928 = vadd.f32 %v1927, 0.18741608
        %v1929 = vmul.f32 %v1920, %v1928
        %v1930 = vadd.f32 %v1929, 1.1283791
        %v1931 = vmul.f32 %v1837, %v1930
        %v1932 = vmul.f32 %v1920, 3.8918573e-05
        %v1933 = vadd.f32 %v1932, 0.001143296
        %v1934 = vmul.f32 %v1920, %v1933
        %v1935 = vadd.f32 %v1934, 0.014752088
        %v1936 = vmul.f32 %v1920, %v1935
        %v1937 = vadd.f32 %v1936, 0.112945676
        %v1938 = vmul.f32 %v1920, %v1937
        %v1939 = vadd.f32 %v1938, 0.4994258
        %v1940 = vmul.f32 %v1920, %v1939
        %v1941 = vadd.f32 %v1940, 1.0
        %v1942 = vrcp.pop %v1941
        %v1943 = vmul.f32 %v1941, %v1942
        %v1944 = vsub.f32 1.0, %v1943
        %v1945 = vmul.f32 %v1942, %v1944
        %v1946 = vadd.f32 %v1942, %v1945
        %vm1947 = vweird.f32 %v1941
        %vm1948 = vweird.f32 %v1942
        %vm1949 = vmor %vm1947, %vm1948
        %v1950 = vsel %vm1949, %v1942, %v1946
        %v1951 = vand.u32 2147483647, %v1941
        %vm1952 = vcmp.eq.f32.partialorder %v1951, 8.507059e+37
        %v1953 = vand.u32 %v1941, 2147483648
        %v1954 = vor.u32 1.1754944e-38, %v1953
        %v1955 = vsel %vm1952, %v1954, %v1950
        %v1956 = vmul.f32 %v1931, %v1955
        %v1957 = vmin.f32 %v1956, 1.0
        %v1958 = vmax.f32 %v1957, -1.0
        %v1959 = vmul.f32 %v1838, %v1838
        %v1960 = vmin.f32 16.0, %v1959
        %v1961 = vmul.f32 %v1960, 2.1237322e-06
        %v1962 = vadd.f32 %v1961, 0.00028619796
        %v1963 = vmul.f32 %v1960, %v1962
        %v1964 = vadd.f32 %v1963, 0.0036580483
        %v1965 = vmul.f32 %v1960, %v1964
        %v1966 = vadd.f32 %v1965, 0.05243302
        %v1967 = vmul.f32 %v1960, %v1966
        %v1968 = vadd.f32 %v1967, 0.18741608
        %v1969 = vmul.f32 %v1960, %v1968
        %v1970 = vadd.f32 %v1969, 1.1283791
        %v1971 = vmul.f32 %v1838, %v1970
        %v1972 = vmul.f32 %v1960, 3.8918573e-05
        %v1973 = vadd.f32 %v1972, 0.001143296
        %v1974 = vmul.f32 %v1960, %v1973
        %v1975 = vadd.f32 %v1974, 0.014752088
        %v1976 = vmul.f32 %v1960, %v1975
        %v1977 = vadd.f32 %v1976, 0.112945676
        %v1978 = vmul.f32 %v1960, %v1977
        %v1979 = vadd.f32 %v1978, 0.4994258
        %v1980 = vmul.f32 %v1960, %v1979
        %v1981 = vadd.f32 %v1980, 1.0
        %v1982 = vrcp.pop %v1981
        %v1983 = vmul.f32 %v1981, %v1982
        %v1984 = vsub.f32 1.0, %v1983
        %v1985 = vmul.f32 %v1982, %v1984
        %v1986 = vadd.f32 %v1982, %v1985
        %vm1987 = vweird.f32 %v1981
        %vm1988 = vweird.f32 %v1982
        %vm1989 = vmor %vm1987, %vm1988
        %v1990 = vsel %vm1989, %v1982, %v1986
        %v1991 = vand.u32 2147483647, %v1981
        %vm1992 = vcmp.eq.f32.partialorder %v1991, 8.507059e+37
        %v1993 = vand.u32 %v1981, 2147483648
        %v1994 = vor.u32 1.1754944e-38, %v1993
        %v1995 = vsel %vm1992, %v1994, %v1990
        %v1996 = vmul.f32 %v1971, %v1995
        %v1997 = vmin.f32 %v1996, 1.0
        %v1998 = vmax.f32 %v1997, -1.0
        %v1999 = vadd.f32 %v1878, 1.0
        %v2000 = vadd.f32 %v1918, 1.0
        %v2001 = vadd.f32 %v1958, 1.0
        %v2002 = vadd.f32 %v1998, 1.0
        %v2003 = vmul.f32 %v1831, %v1999
        %v2004 = vmul.f32 %v1832, %v2000
        %v2005 = vmul.f32 %v1833, %v2001
        %v2006 = vmul.f32 %v1834, %v2002
        %v2007 = vpack.c.bf16 %v2005, %v2003
        %v2008 = vpack.c.bf16 %v2006, %v2004
        %v2009 = vld [vmem:[#allocation14] sm:$0xf]
        %v2010 = vld [vmem:[#allocation14 + $0x4] sm:$0xf]
        %v2011 = vld [vmem:[#allocation14 + $0x8] sm:$0xf]
        %v2012 = vld [vmem:[#allocation14 + $0xc] sm:$0xf]
        %v2013 = vld [vmem:[#allocation14 + $0x10] sm:$0xf]
        %v2014 = vld [vmem:[#allocation14 + $0x14] sm:$0xf]
        %v2015 = vld [vmem:[#allocation14 + $0x18] sm:$0xf]
        %v2016 = vld [vmem:[#allocation14 + $0x1c] sm:$0xf]
        %v2017 = vld [vmem:[#allocation14 + $0x20] sm:$0xf]
        %v2018 = vld [vmem:[#allocation14 + $0x24] sm:$0xf]
        %v2019 = vld [vmem:[#allocation14 + $0x28] sm:$0xf]
        %v2020 = vld [vmem:[#allocation14 + $0x2c] sm:$0xf]
        %v2021 = vld [vmem:[#allocation14 + $0x30] sm:$0xf]
        %v2022 = vld [vmem:[#allocation14 + $0x34] sm:$0xf]
        %v2023 = vld [vmem:[#allocation14 + $0x38] sm:$0xf]
        %v2024 = vld [vmem:[#allocation14 + $0x3c] sm:$0xf]
        %v2025 = vld [vmem:[#allocation14 + $0x40] sm:$0xf]
        %v2026 = vld [vmem:[#allocation14 + $0x44] sm:$0xf]
        %v2027 = vld [vmem:[#allocation14 + $0x48] sm:$0xf]
        %v2028 = vld [vmem:[#allocation14 + $0x4c] sm:$0xf]
        %v2029 = vld [vmem:[#allocation14 + $0x50] sm:$0xf]
        %v2030 = vld [vmem:[#allocation14 + $0x54] sm:$0xf]
        %v2031 = vld [vmem:[#allocation14 + $0x58] sm:$0xf]
        %v2032 = vld [vmem:[#allocation14 + $0x5c] sm:$0xf]
        %v2033 = vld [vmem:[#allocation14 + $0x60] sm:$0xf]
        %v2034 = vld [vmem:[#allocation14 + $0x64] sm:$0xf]
        %v2035 = vld [vmem:[#allocation14 + $0x68] sm:$0xf]
        %v2036 = vld [vmem:[#allocation14 + $0x6c] sm:$0xf]
        %v2037 = vld [vmem:[#allocation14 + $0x70] sm:$0xf]
        %v2038 = vld [vmem:[#allocation14 + $0x74] sm:$0xf]
        %v2039 = vld [vmem:[#allocation14 + $0x78] sm:$0xf]
        %v2040 = vld [vmem:[#allocation14 + $0x7c] sm:$0xf]
        %v2041 = vperm.slane %v496, 0
        %v2074 = vunpack.c.l.b16 %v2009
        %v2075 = vunpack.c.l.b16 %v2010
        %v2076 = vunpack.c.l.b16 %v2011
        %v2077 = vunpack.c.l.b16 %v2012
        %v2078 = vunpack.c.l.b16 %v2013
        %v2079 = vunpack.c.l.b16 %v2014
        %v2080 = vunpack.c.l.b16 %v2015
        %v2081 = vunpack.c.l.b16 %v2016
        %v2082 = vunpack.c.l.b16 %v2017
        %v2083 = vunpack.c.l.b16 %v2018
        %v2084 = vunpack.c.l.b16 %v2019
        %v2085 = vunpack.c.l.b16 %v2020
        %v2086 = vunpack.c.l.b16 %v2021
        %v2087 = vunpack.c.l.b16 %v2022
        %v2088 = vunpack.c.l.b16 %v2023
        %v2089 = vunpack.c.l.b16 %v2024
        %v2090 = vunpack.c.l.b16 %v2025
        %v2091 = vunpack.c.l.b16 %v2026
        %v2092 = vunpack.c.l.b16 %v2027
        %v2093 = vunpack.c.l.b16 %v2028
        %v2094 = vunpack.c.l.b16 %v2029
        %v2095 = vunpack.c.l.b16 %v2030
        %v2096 = vunpack.c.l.b16 %v2031
        %v2097 = vunpack.c.l.b16 %v2032
        %v2098 = vunpack.c.l.b16 %v2033
        %v2099 = vunpack.c.l.b16 %v2034
        %v2100 = vunpack.c.l.b16 %v2035
        %v2101 = vunpack.c.l.b16 %v2036
        %v2102 = vunpack.c.l.b16 %v2037
        %v2103 = vunpack.c.l.b16 %v2038
        %v2104 = vunpack.c.l.b16 %v2039
        %v2105 = vunpack.c.l.b16 %v2040
        %v2106 = vpack.c.b16 %v2075, %v2074
        %v2107 = vpack.c.b16 %v2077, %v2076
        %v2108 = vpack.c.b16 %v2079, %v2078
        %v2109 = vpack.c.b16 %v2081, %v2080
        %v2110 = vpack.c.b16 %v2083, %v2082
        %v2111 = vpack.c.b16 %v2085, %v2084
        %v2112 = vpack.c.b16 %v2087, %v2086
        %v2113 = vpack.c.b16 %v2089, %v2088
        %v2114 = vpack.c.b16 %v2091, %v2090
        %v2115 = vpack.c.b16 %v2093, %v2092
        %v2116 = vpack.c.b16 %v2095, %v2094
        %v2117 = vpack.c.b16 %v2097, %v2096
        %v2118 = vpack.c.b16 %v2099, %v2098
        %v2119 = vpack.c.b16 %v2101, %v2100
        %v2120 = vpack.c.b16 %v2103, %v2102
        %v2121 = vpack.c.b16 %v2105, %v2104
        %2138 = vmatpush.bf16.msra.mxu0 %v2113
        %2139 = vmatpush.bf16.msra.mxu0 %v2112
        %2140 = vmatpush.bf16.msra.mxu0 %v2111
        %2141 = vmatpush.bf16.msra.mxu0 %v2110
        %2142 = vmatpush.bf16.msra.mxu0 %v2109
        %2143 = vmatpush.bf16.msra.mxu0 %v2108
        %2144 = vmatpush.bf16.msra.mxu0 %v2107
        %2145 = vmatpush.bf16.msra.mxu0 %v2106
        %2146 = vmatmul.bf16.gmra.mxu0 %v2007
        %v2147 = vpop.f32.mrf.mxu0
        %v2148 = vadd.f32 %v2041, %v2147
        %v2149 = vpop.f32.mrf.mxu0
        %v2150 = vadd.f32 %v2041, %v2149
        %2151 = vdwg.mxu0
        %2152 = vmatpush.bf16.msra.mxu0 %v2121
        %2153 = vmatpush.bf16.msra.mxu0 %v2120
        %2154 = vmatpush.bf16.msra.mxu0 %v2119
        %2155 = vmatpush.bf16.msra.mxu0 %v2118
        %2156 = vmatpush.bf16.msra.mxu0 %v2117
        %2157 = vmatpush.bf16.msra.mxu0 %v2116
        %2158 = vmatpush.bf16.msra.mxu0 %v2115
        %2159 = vmatpush.bf16.msra.mxu0 %v2114
        %2160 = vmatmul.bf16.gmra.mxu0 %v2008
        %v2161 = vpop.f32.mrf.mxu0
        %v2162 = vadd.f32 %v2148, %v2161
        %v2163 = vpop.f32.mrf.mxu0
        %v2164 = vadd.f32 %v2150, %v2163
        %2165 = vdwg.mxu0
        %v2166 = vadd.f32 %v1652, %v2162
        %v2167 = vadd.f32 %v1653, %v2164
        %2168 = vst [vmem:[%s493] sm:$0xff] %v2166
        %2169 = vst [vmem:[%s493 + $0x8] sm:$0xff] %v2167
        %s2170 = sand.u32 %s239, 1
        %s2171 = scalar_lea.sflag [#allocation4], %s2170
        %s2172 = sand.u32 %s239, 1
        %s2173 = smul.addr %s2172, 16
        %s2174 = scalar_lea.vmem [#allocation16], %s2173
        // Predicated region
        $region89: #{tpu_custom_call.1} parent=55 // pred_check
          %p2175 = pneg %p249
        $region90: #{tpu_custom_call.1} parent=55 // pred_check_branch
          %2177 = sbr.rel (%p2175) target = $region92
        $region91: #{tpu_custom_call.1} parent=55 // pred_region
          %2179 = vsyncadd %s2171, 0
          %s2180 = smul.addr %s32, 2
          %s2181 = smul.addr %s2180, 8
          %s2182 = scalar_lea.hbm %s9, %s2181
          %s2183 = sshll.u32 %s2174, 4
          %s2184 = int_to_ptr.vmem [resolvable:$true] %s2183
          %s2185 = sshll.u32 %s2182, 4
          %s2186 = int_to_ptr.hbm [resolvable:$true] %s2185
          %2191 = dma.vmem_to_hbm [thread:$0]  %s2184, 256, %s2186, %s2171, 128, 128, 8
        $region92: #{tpu_custom_call.1} parent=55 // pred_fallthru
          _
      $region56: #{tpu_custom_call.1} parent=5 // pred_fallthru
        _
      %p2192 = scmp.le.s32.totalorder 2, %s27
      // Predicated region
      $region93: #{tpu_custom_call.1} parent=5 // pred_check
        %p2193 = pneg %p2192
      $region94: #{tpu_custom_call.1} parent=5 // pred_check_branch
        %2195 = sbr.rel (%p2193) target = $region96
      $region95: #{tpu_custom_call.1} parent=5 // pred_region
        %s2196 = ssub.s32 %s27, 2
        // Predicated region
        $region97: #{tpu_custom_call.1} parent=95 // pred_check
          %p2197 = pneg %p255
        $region98: #{tpu_custom_call.1} parent=95 // pred_check_branch
          %2199 = sbr.rel (%p2197) target = $region100
        $region99: #{tpu_custom_call.1} parent=95 // pred_region
          %s2200 = sand.u32 %s240, 1
          %s2201 = scalar_lea.sflag [#allocation4], %s2200
          %s2202 = sand.u32 %s240, 1
          %s2203 = smul.addr %s2202, 16
          %s2204 = scalar_lea.vmem [#allocation16], %s2203
          %2206 = dma.done %s2201, 256
        $region100: #{tpu_custom_call.1} parent=95 // pred_fallthru
          _
      $region96: #{tpu_custom_call.1} parent=5 // pred_fallthru
        _
    $region6: #{tpu_custom_call.1} parent=1 // loop_footer
      %s31 = sadd.s32 1, %s27
    $region7: #{tpu_custom_call.1} parent=1 // loop_footer_branch
      %26 = sbr.rel target = $region3
    $region8: #{tpu_custom_call.1} parent=1 // loop_exit
      _
    %2207 = vsyncpa [#allocation3], 1
    %s2208 = scalar_lea.sflag [#allocation3], 1
    %2209 = vsyncpa %s2208, 1
    %2210 = vsyncpa [#allocation6], 1
    %s2211 = scalar_lea.sflag [#allocation6], 1
    %2212 = vsyncpa %s2211, 1
    %2213 = vsyncpa [#allocation9], 1
    %2214 = vsyncpa [#allocation12], 1
    %2215 = vsyncpa [#allocation15], 1
    %2216 = vsyncpa [#allocation4], 1
    %s2217 = scalar_lea.sflag [#allocation4], 1
    %2218 = vsyncpa %s2217, 1

</llo_original>
